<compile_context>
chip_gen: v6e
topology: v6e:2x2x1
jax: 0.10.0
libtpu: 0.0.40
codegen_flags: <defaults>
</compile_context>

<pallas_src>
import jax
import jax.numpy as jnp
from jax.experimental import pallas as pl
from jax.experimental.pallas import tpu as pltpu

EPS = 1e-5
NEG_SLOPE = 0.2  # nn.LeakyReLU(0.2)


def _residual_block_kernel(x_ref, we_ref, t1_ref, a1_ref, g1_ref, b1_ref,
                           t2_ref, a2_ref, g2_ref, b2_ref,
                           out_ref, im1_ref, im2_ref):
    """All refs are full-array VMEM blocks (shapes are tiny; no grid).

    x_ref    : (N, H, W*Cin)        bf16  activations, row layout
    we_ref   : (W*Cin, W*Cout)      bf16  block-diagonal 1x1 conv_expand weight
    t1_ref   : (3*W*Cin, W*Cmid)    bf16  conv1 stacked block-Toeplitz weight
    a1_ref   : (W*Cmid, W*Cmid)     f32   channel-averaging matrix / (N*H*W)
    g1_ref/b1_ref : (1, W*Cmid)     f32   bn1 gamma/beta, lane-tiled
    t2_ref   : (3*W*Cmid, W*Cout)   bf16
    a2_ref   : (W*Cout, W*Cout)     f32
    g2_ref/b2_ref : (1, W*Cout)     f32
    out_ref  : (N*H, W*Cout)        f32   lane-dense output rows
    im1_ref  : (N, H, 3*W*Cin)      bf16  scratch: conv1 im2row (kh-fused LHS)
    im2_ref  : (N, H, 3*W*Cmid)     bf16  scratch: conv2 im2row
    """
    N, H, WCi = x_ref.shape
    WCm = t1_ref.shape[-1]
    WCo = t2_ref.shape[-1]
    NH = N * H
    cdt = x_ref.dtype  # bf16 matmul operand dtype

    def build_im2row(dst_ref, rows, wc):
        # Lane-concatenate rows h-1 | h | h+1 (the kh taps) so the whole 3x3
        # conv is a single K = 3*wc matmul.  Every scratch element is written
        # exactly once; only the two halo row-bands are zeroed.
        zrow = jnp.zeros((N, 1, wc), cdt)
        dst_ref[:, :, wc:2 * wc] = rows                        # kh = 1 (h)
        dst_ref[:, 1:H, 0:wc] = rows[:, 0:H - 1, :]            # kh = 0 (h-1)
        dst_ref[:, 0:1, 0:wc] = zrow
        dst_ref[:, 0:H - 1, 2 * wc:3 * wc] = rows[:, 1:H, :]   # kh = 2 (h+1)
        dst_ref[:, H - 1:H, 2 * wc:3 * wc] = zrow

    def bn_lrelu(act, a_ref, g_ref, b_ref):
        # Single-pass training-mode BatchNorm2d + LeakyReLU(0.2).
        # Both per-lane reductions are batched into ONE (2, WC) matmul against
        # a_ref, which folds "sum over the W groups, divide by N*H*W, broadcast
        # back to lanes", so stats never leave the lane-dense layout.
        s1 = jnp.sum(act, axis=0, keepdims=True)            # (1, WC)
        s2 = jnp.sum(act * act, axis=0, keepdims=True)      # (1, WC)
        stats = jnp.dot(jnp.concatenate([s1, s2], axis=0), a_ref[...],
                        preferred_element_type=jnp.float32)  # (2, WC)
        mean_l = stats[0:1, :]
        ex2_l = stats[1:2, :]
        # TODO(synk): E[x^2]-E[x]^2 in f32 can cancel badly if |mean| >> std;
        # use a two-pass / Welford variant for the general module.
        var_l = ex2_l - mean_l * mean_l
        scale = g_ref[...] * jax.lax.rsqrt(var_l + EPS)
        shift = b_ref[...] - mean_l * scale
        y = act * scale + shift                 # fused affine: mul + add
        return jnp.maximum(y, NEG_SLOPE * y)    # LeakyReLU(0.2): mul + max

    x = x_ref[...]  # load once; reused by conv1 im2row and conv_expand

    # ---- conv1 (one MXU push, K = 3*W*Cin) -> bn1 -> LeakyReLU
    build_im2row(im1_ref, x, WCi)
    acc1 = jnp.dot(im1_ref[...].reshape(NH, 3 * WCi), t1_ref[...],
                   preferred_element_type=jnp.float32)
    y1 = bn_lrelu(acc1, a1_ref, g1_ref, b1_ref)

    # ---- conv2 im2row from bf16 conv1 activations
    build_im2row(im2_ref, y1.astype(cdt).reshape(N, H, WCm), WCm)

    # ---- identity branch: 1x1 conv_expand as one block-diagonal matmul,
    # computed late so the f32 result is not live across conv1 + bn1.
    identity = jnp.dot(x.reshape(NH, WCi), we_ref[...],
                       preferred_element_type=jnp.float32)

    # ---- conv2 (one MXU push, K = 3*W*Cmid) + identity -> bn2 -> LeakyReLU
    acc2 = jnp.dot(im2_ref[...].reshape(NH, 3 * WCm), t2_ref[...],
                   preferred_element_type=jnp.float32) + identity
    # TODO(synk): emit bf16 here when the consumer is the next bf16 block
    # (halves output vst / HBM writeback at scaled shapes).
    out_ref[...] = bn_lrelu(acc2, a2_ref, g2_ref, b2_ref)


# --------------------------- host-side weight packing ---------------------------

def _toeplitz_3x3(w_hwio, width):
    """(3,3,Ci,Co) HWIO conv weight -> (3, width*Ci, width*Co) block-Toeplitz.

    T[kh, wi*Ci+ci, wo*Co+co] = w[kh, wi-wo+1, ci, co] when 0<=wi-wo+1<=2, else 0,
    i.e. the kw taps and the W-axis 'padding=1' zeros are folded into the weight.
    """
    wi = jnp.arange(width)[:, None, None]
    wo = jnp.arange(width)[None, :, None]
    kw = jnp.arange(3)[None, None, :]
    sel = (wi == wo + kw - 1).astype(w_hwio.dtype)        # (W, W, 3)
    t = jnp.einsum('abk,hkio->haibo', sel, w_hwio)        # (3, W, Ci, W, Co)
    kh, _, ci, _, co = t.shape
    return t.reshape(kh, width * ci, width * co)


def _block_diag_1x1(w_io, width):
    """(Ci,Co) 1x1 conv weight -> (width*Ci, width*Co) block-diagonal matrix."""
    eye = jnp.eye(width, dtype=w_io.dtype)
    ci, co = w_io.shape
    return jnp.einsum('ab,io->aibo', eye, w_io).reshape(width * ci, width * co)


def _channel_avg(width, c, count):
    """(width*c, width*c) matrix: right-multiplying a per-lane column-sum by it
    gives the per-channel mean already broadcast back to every (w, c) lane."""
    # TODO(synk): for large W*C replace with log2(W) strided pltpu.roll+add
    # steps in-kernel (XLU) — this matrix scales quadratically with W*C.
    lane = jnp.arange(width * c)
    same_c = (lane[:, None] % c) == (lane[None, :] % c)
    return same_c.astype(jnp.float32) / float(count)


def pack_params(params, *, batch, height, width, inc, compute_dtype=jnp.bfloat16):
    """Pack PyTorch-layout weights into the kernel's lane-dense operands."""
    we, w1, g1, b1, w2, g2, b2 = params
    cmid = w1.shape[-1]
    cout = w2.shape[-1]
    if we is None:  # inc == outc in the module -> identity branch is x itself
        we = jnp.eye(inc, dtype=jnp.float32)
    t1 = (_toeplitz_3x3(w1.astype(jnp.float32), width)
          .reshape(3 * width * inc, width * cmid).astype(compute_dtype))
    t2 = (_toeplitz_3x3(w2.astype(jnp.float32), width)
          .reshape(3 * width * cmid, width * cout).astype(compute_dtype))
    we_blk = _block_diag_1x1(we.astype(jnp.float32), width).astype(compute_dtype)
    count = batch * height * width
    a1 = _channel_avg(width, cmid, count)
    a2 = _channel_avg(width, cout, count)
    g1l = jnp.tile(g1.astype(jnp.float32), width).reshape(1, width * cmid)
    b1l = jnp.tile(b1.astype(jnp.float32), width).reshape(1, width * cmid)
    g2l = jnp.tile(g2.astype(jnp.float32), width).reshape(1, width * cout)
    b2l = jnp.tile(b2.astype(jnp.float32), width).reshape(1, width * cout)
    return (we_blk, t1, a1, g1l, b1l, t2, a2, g2l, b2l)


def residual_block_rows(x_rows, packed, *, compute_dtype=jnp.bfloat16):
    """Row-layout entry point: x_rows (N, H, W*Cin) -> (N, H, W*Cout) f32.

    Chain blocks through this function to keep activations in the lane-dense
    row layout across the network (no per-block NCHW transposes)."""
    we_blk, t1, a1, g1l, b1l, t2, a2, g2l, b2l = packed
    N, H, WCi = x_rows.shape
    WCm = t1.shape[-1]
    WCo = t2.shape[-1]

    vmem = pl.BlockSpec(memory_space=pltpu.MemorySpace.VMEM)
    out_rows = pl.pallas_call(
        _residual_block_kernel,
        out_shape=jax.ShapeDtypeStruct((N * H, WCo), jnp.float32),
        in_specs=[vmem] * 10,
        out_specs=vmem,
        scratch_shapes=[pltpu.VMEM((N, H, 3 * WCi), compute_dtype),
                        pltpu.VMEM((N, H, 3 * WCm), compute_dtype)],
        # Explicit (generous) scoped-VMEM cap; actual footprint here is < 1 MiB.
        # TODO(synk): for production N/H/W/C, add a grid over N (and H-row
        # blocks with a 2-row halo) with dimension_semantics=('parallel', ...)
        # so both v7x TensorCores are used, a two-pass BatchNorm, 256-granular
        # M/K/N tiles for the v6e/v7x MXU, and a banded Toeplitz (or C-dense
        # layout once C >= 128) to kill the ~W/3 FLOP inflation.
        compiler_params=pltpu.CompilerParams(vmem_limit_bytes=32 * 1024 * 1024),
    )(x_rows.astype(compute_dtype), we_blk, t1, a1, g1l, b1l, t2, a2, g2l, b2l)
    return out_rows.reshape(N, H, WCo)


def residual_block(x_nchw, params, *, compute_dtype=jnp.bfloat16):
    """NCHW module-boundary wrapper: (N, Cin, H, W) f32 -> (N, Cout, H, W) f32."""
    N, Cin, H, W = x_nchw.shape
    Cout = params[4].shape[-1]  # w2: (3, 3, Cmid, Cout)
    packed = pack_params(params, batch=N, height=H, width=W, inc=Cin,
                         compute_dtype=compute_dtype)
    x_rows = jnp.transpose(x_nchw, (0, 2, 3, 1)).reshape(N, H, W * Cin)
    out_rows = residual_block_rows(x_rows, packed, compute_dtype=compute_dtype)
    out = out_rows.reshape(N, H, W, Cout)       # free reshape (lane-dense rows)
    return jnp.transpose(out, (0, 3, 1, 2))     # back to NCHW at the boundary


def residual_block_ref(x_nchw, params, *, compute_dtype=jnp.bfloat16):
    """Pure-JAX reference mirroring the PyTorch forward; conv operands use the
    same bf16 inputs / f32 accumulation as the kernel so tolerances stay tight."""
    we, w1, g1, b1, w2, g2, b2 = params
    N, Cin, H, W = x_nchw.shape
    if we is None:
        we = jnp.eye(Cin, dtype=jnp.float32)
    x = jnp.transpose(x_nchw, (0, 2, 3, 1)).astype(jnp.float32)
    dn = ('NHWC', 'HWIO', 'NHWC')

    def conv(t, w):
        return jax.lax.conv_general_dilated(
            t.astype(compute_dtype), w.astype(compute_dtype), (1, 1), 'SAME',
            dimension_numbers=dn, preferred_element_type=jnp.float32)

    def bn_lrelu(t, g, b):
        m = t.mean(axis=(0, 1, 2), keepdims=True)
        v = ((t - m) ** 2).mean(axis=(0, 1, 2), keepdims=True)
        y = (t - m) / jnp.sqrt(v + EPS) * g.reshape(1, 1, 1, -1) + b.reshape(1, 1, 1, -1)
        return jnp.where(y >= 0, y, NEG_SLOPE * y)

    identity = conv(x, we.reshape(1, 1, *we.shape))
    o = bn_lrelu(conv(x, w1), g1, b1)
    o = bn_lrelu(conv(o, w2) + identity, g2, b2)
    return jnp.transpose(o, (0, 3, 1, 2))


if __name__ == "__main__":
    # inc=4, outc=8 (inc != outc -> conv_expand present), groups=1, scale=1.0.
    N, Cin, H, W = 2, 4, 16, 16
    Cout = 8
    Cmid = int(Cout * 1.0)

    key = jax.random.PRNGKey(0)
    ks = jax.random.split(key, 8)
    x = jax.random.normal(ks[0], (N, Cin, H, W), jnp.float32)

    we = jax.random.normal(ks[1], (Cin, Cout), jnp.float32) * 0.2         # conv_expand 1x1
    w1 = jax.random.normal(ks[2], (3, 3, Cin, Cmid), jnp.float32) * 0.2   # conv1 3x3 (HWIO)
    w2 = jax.random.normal(ks[3], (3, 3, Cmid, Cout), jnp.float32) * 0.2  # conv2 3x3 (HWIO)
    g1 = 1.0 + 0.1 * jax.random.normal(ks[4], (Cmid,), jnp.float32)       # bn1 weight
    b1 = 0.1 * jax.random.normal(ks[5], (Cmid,), jnp.float32)             # bn1 bias
    g2 = 1.0 + 0.1 * jax.random.normal(ks[6], (Cout,), jnp.float32)       # bn2 weight
    b2 = 0.1 * jax.random.normal(ks[7], (Cout,), jnp.float32)             # bn2 bias
    params = (we, w1, g1, b1, w2, g2, b2)

    run = jax.jit(residual_block)
    out = jax.block_until_ready(run(x, params))
    ref = jax.block_until_ready(residual_block_ref(x, params))

    assert out.shape == (N, Cout, H, W), out.shape
    # bf16 matmul operands on both sides; residual differences come only from
    # f32 accumulation order and the fused E[x^2]-E[x]^2 variance.
    err = float(jnp.max(jnp.abs(out - ref)))
    assert jnp.allclose(out, ref, rtol=2e-3, atol=2e-3), err
    print("KERNEL_OK")
</pallas_src>

<mosaic_0001>
module attributes {stable_mosaic.version = 11 : i64} {
  func.func @_residual_block_kernel(%arg0: memref<2x16x64xbf16, #tpu.memory_space<vmem>>, %arg1: memref<64x128xbf16, #tpu.memory_space<vmem>>, %arg2: memref<192x128xbf16, #tpu.memory_space<vmem>>, %arg3: memref<128x128xf32, #tpu.memory_space<vmem>>, %arg4: memref<1x128xf32, #tpu.memory_space<vmem>>, %arg5: memref<1x128xf32, #tpu.memory_space<vmem>>, %arg6: memref<384x128xbf16, #tpu.memory_space<vmem>>, %arg7: memref<128x128xf32, #tpu.memory_space<vmem>>, %arg8: memref<1x128xf32, #tpu.memory_space<vmem>>, %arg9: memref<1x128xf32, #tpu.memory_space<vmem>>, %arg10: memref<32x128xf32, #tpu.memory_space<vmem>>, %arg11: memref<2x16x192xbf16, #tpu.memory_space<vmem>>, %arg12: memref<2x16x384xbf16, #tpu.memory_space<vmem>>) attributes {dimension_semantics = [], scalar_prefetch = 0 : i64, scratch_operands = 2 : i64, tpu.core_type = #tpu.core_type<tc>} {
    %c0 = arith.constant 0 : index
    %c0_0 = arith.constant 0 : index
    %c0_1 = arith.constant 0 : index
    %0 = vector.load %arg0[%c0, %c0_0, %c0_1] : memref<2x16x64xbf16, #tpu.memory_space<vmem>>, vector<2x16x64xbf16>
    %cst = arith.constant 0.000000e+00 : bf16
    %1 = vector.broadcast %cst : bf16 to vector<2x1x64xbf16>
    %c0_2 = arith.constant 0 : index
    %c0_3 = arith.constant 0 : index
    %c64 = arith.constant 64 : index
    %2 = vector.load %arg11[%c0_2, %c0_3, %c64] : memref<2x16x192xbf16, #tpu.memory_space<vmem>>, vector<2x16x64xbf16>
    tpu.vector_store %arg11[%c0_2, %c0_3, %c64], %0 {strides = array<i32>} : memref<2x16x192xbf16, #tpu.memory_space<vmem>>, vector<2x16x64xbf16>,
    %3 = vector.extract_strided_slice %0 {offsets = [0, 0, 0], sizes = [2, 15, 64], strides = [1, 1, 1]} : vector<2x16x64xbf16> to vector<2x15x64xbf16>
    %c0_4 = arith.constant 0 : index
    %c1 = arith.constant 1 : index
    %c0_5 = arith.constant 0 : index
    %4 = vector.load %arg11[%c0_4, %c1, %c0_5] : memref<2x16x192xbf16, #tpu.memory_space<vmem>>, vector<2x15x64xbf16>
    tpu.vector_store %arg11[%c0_4, %c1, %c0_5], %3 {strides = array<i32>} : memref<2x16x192xbf16, #tpu.memory_space<vmem>>, vector<2x15x64xbf16>,
    %c0_6 = arith.constant 0 : index
    %c0_7 = arith.constant 0 : index
    %c0_8 = arith.constant 0 : index
    %5 = vector.load %arg11[%c0_6, %c0_7, %c0_8] : memref<2x16x192xbf16, #tpu.memory_space<vmem>>, vector<2x1x64xbf16>
    tpu.vector_store %arg11[%c0_6, %c0_7, %c0_8], %1 {strides = array<i32>} : memref<2x16x192xbf16, #tpu.memory_space<vmem>>, vector<2x1x64xbf16>,
    %6 = vector.extract_strided_slice %0 {offsets = [0, 1, 0], sizes = [2, 15, 64], strides = [1, 1, 1]} : vector<2x16x64xbf16> to vector<2x15x64xbf16>
    %c0_9 = arith.constant 0 : index
    %c0_10 = arith.constant 0 : index
    %c128 = arith.constant 128 : index
    %7 = vector.load %arg11[%c0_9, %c0_10, %c128] : memref<2x16x192xbf16, #tpu.memory_space<vmem>>, vector<2x15x64xbf16>
    tpu.vector_store %arg11[%c0_9, %c0_10, %c128], %6 {strides = array<i32>} : memref<2x16x192xbf16, #tpu.memory_space<vmem>>, vector<2x15x64xbf16>,
    %c0_11 = arith.constant 0 : index
    %c15 = arith.constant 15 : index
    %c128_12 = arith.constant 128 : index
    %8 = vector.load %arg11[%c0_11, %c15, %c128_12] : memref<2x16x192xbf16, #tpu.memory_space<vmem>>, vector<2x1x64xbf16>
    tpu.vector_store %arg11[%c0_11, %c15, %c128_12], %1 {strides = array<i32>} : memref<2x16x192xbf16, #tpu.memory_space<vmem>>, vector<2x1x64xbf16>,
    %c0_13 = arith.constant 0 : index
    %c0_14 = arith.constant 0 : index
    %c0_15 = arith.constant 0 : index
    %9 = vector.load %arg11[%c0_13, %c0_14, %c0_15] : memref<2x16x192xbf16, #tpu.memory_space<vmem>>, vector<2x16x192xbf16>
    %10 = vector.shape_cast %9 : vector<2x16x192xbf16> to vector<32x192xbf16>
    %c0_16 = arith.constant 0 : index
    %c0_17 = arith.constant 0 : index
    %11 = vector.load %arg2[%c0_16, %c0_17] : memref<192x128xbf16, #tpu.memory_space<vmem>>, vector<192x128xbf16>
    %cst_18 = arith.constant dense<0.000000e+00> : vector<32x128xf32>
    %12 = tpu.matmul %10, %11, %cst_18 {dimension_numbers = #tpu.dot_dimension_numbers<[1], [0], [0], [1], [0, 0, 1, 1], [], []>} : vector<32x192xbf16>, vector<192x128xbf16>, vector<32x128xf32> -> vector<32x128xf32>
    %cst_19 = arith.constant dense<0.000000e+00> : vector<128xf32>
    %13 = vector.multi_reduction <add>, %12, %cst_19 [0] : vector<32x128xf32> to vector<128xf32>
    %14 = vector.shape_cast %13 : vector<128xf32> to vector<1x128xf32>
    %15 = arith.mulf %12, %12 : vector<32x128xf32>
    %cst_20 = arith.constant dense<0.000000e+00> : vector<128xf32>
    %16 = vector.multi_reduction <add>, %15, %cst_20 [0] : vector<32x128xf32> to vector<128xf32>
    %17 = vector.shape_cast %16 : vector<128xf32> to vector<1x128xf32>
    %18 = tpu.concatenate %14, %17 in 0 : vector<1x128xf32>, vector<1x128xf32> -> vector<2x128xf32>
    %c0_21 = arith.constant 0 : index
    %c0_22 = arith.constant 0 : index
    %19 = vector.load %arg3[%c0_21, %c0_22] : memref<128x128xf32, #tpu.memory_space<vmem>>, vector<128x128xf32>
    %cst_23 = arith.constant dense<0.000000e+00> : vector<2x128xf32>
    %20 = tpu.matmul %18, %19, %cst_23 {dimension_numbers = #tpu.dot_dimension_numbers<[1], [0], [0], [1], [0, 0, 1, 1], [], []>} : vector<2x128xf32>, vector<128x128xf32>, vector<2x128xf32> -> vector<2x128xf32>
    %21 = vector.extract_strided_slice %20 {offsets = [0, 0], sizes = [1, 128], strides = [1, 1]} : vector<2x128xf32> to vector<1x128xf32>
    %22 = vector.extract_strided_slice %20 {offsets = [1, 0], sizes = [1, 128], strides = [1, 1]} : vector<2x128xf32> to vector<1x128xf32>
    %23 = arith.mulf %21, %21 : vector<1x128xf32>
    %24 = arith.subf %22, %23 : vector<1x128xf32>
    %c0_24 = arith.constant 0 : index
    %c0_25 = arith.constant 0 : index
    %25 = vector.load %arg4[%c0_24, %c0_25] : memref<1x128xf32, #tpu.memory_space<vmem>>, vector<1x128xf32>
    %cst_26 = arith.constant 9.99999974E-6 : f32
    %26 = vector.broadcast %cst_26 : f32 to vector<1x128xf32>
    %27 = arith.addf %24, %26 : vector<1x128xf32>
    %28 = math.rsqrt %27 : vector<1x128xf32>
    %29 = arith.mulf %25, %28 : vector<1x128xf32>
    %c0_27 = arith.constant 0 : index
    %c0_28 = arith.constant 0 : index
    %30 = vector.load %arg5[%c0_27, %c0_28] : memref<1x128xf32, #tpu.memory_space<vmem>>, vector<1x128xf32>
    %31 = arith.mulf %21, %29 : vector<1x128xf32>
    %32 = arith.subf %30, %31 : vector<1x128xf32>
    %33 = vector.broadcast %29 : vector<1x128xf32> to vector<32x128xf32>
    %34 = arith.mulf %12, %33 : vector<32x128xf32>
    %35 = vector.broadcast %32 : vector<1x128xf32> to vector<32x128xf32>
    %36 = arith.addf %34, %35 : vector<32x128xf32>
    %cst_29 = arith.constant 2.000000e-01 : f32
    %37 = vector.broadcast %cst_29 : f32 to vector<32x128xf32>
    %38 = arith.mulf %37, %36 : vector<32x128xf32>
    %39 = arith.maximumf %36, %38 : vector<32x128xf32>
    %40 = arith.truncf %39 : vector<32x128xf32> to vector<32x128xbf16>
    %41 = vector.shape_cast %40 : vector<32x128xbf16> to vector<2x16x128xbf16>
    %cst_30 = arith.constant 0.000000e+00 : bf16
    %42 = vector.broadcast %cst_30 : bf16 to vector<2x1x128xbf16>
    %c0_31 = arith.constant 0 : index
    %c0_32 = arith.constant 0 : index
    %c128_33 = arith.constant 128 : index
    %43 = vector.load %arg12[%c0_31, %c0_32, %c128_33] : memref<2x16x384xbf16, #tpu.memory_space<vmem>>, vector<2x16x128xbf16>
    tpu.vector_store %arg12[%c0_31, %c0_32, %c128_33], %41 {strides = array<i32>} : memref<2x16x384xbf16, #tpu.memory_space<vmem>>, vector<2x16x128xbf16>,
    %44 = vector.extract_strided_slice %41 {offsets = [0, 0, 0], sizes = [2, 15, 128], strides = [1, 1, 1]} : vector<2x16x128xbf16> to vector<2x15x128xbf16>
    %c0_34 = arith.constant 0 : index
    %c1_35 = arith.constant 1 : index
    %c0_36 = arith.constant 0 : index
    %45 = vector.load %arg12[%c0_34, %c1_35, %c0_36] : memref<2x16x384xbf16, #tpu.memory_space<vmem>>, vector<2x15x128xbf16>
    tpu.vector_store %arg12[%c0_34, %c1_35, %c0_36], %44 {strides = array<i32>} : memref<2x16x384xbf16, #tpu.memory_space<vmem>>, vector<2x15x128xbf16>,
    %c0_37 = arith.constant 0 : index
    %c0_38 = arith.constant 0 : index
    %c0_39 = arith.constant 0 : index
    %46 = vector.load %arg12[%c0_37, %c0_38, %c0_39] : memref<2x16x384xbf16, #tpu.memory_space<vmem>>, vector<2x1x128xbf16>
    tpu.vector_store %arg12[%c0_37, %c0_38, %c0_39], %42 {strides = array<i32>} : memref<2x16x384xbf16, #tpu.memory_space<vmem>>, vector<2x1x128xbf16>,
    %47 = vector.extract_strided_slice %41 {offsets = [0, 1, 0], sizes = [2, 15, 128], strides = [1, 1, 1]} : vector<2x16x128xbf16> to vector<2x15x128xbf16>
    %c0_40 = arith.constant 0 : index
    %c0_41 = arith.constant 0 : index
    %c256 = arith.constant 256 : index
    %48 = vector.load %arg12[%c0_40, %c0_41, %c256] : memref<2x16x384xbf16, #tpu.memory_space<vmem>>, vector<2x15x128xbf16>
    tpu.vector_store %arg12[%c0_40, %c0_41, %c256], %47 {strides = array<i32>} : memref<2x16x384xbf16, #tpu.memory_space<vmem>>, vector<2x15x128xbf16>,
    %c0_42 = arith.constant 0 : index
    %c15_43 = arith.constant 15 : index
    %c256_44 = arith.constant 256 : index
    %49 = vector.load %arg12[%c0_42, %c15_43, %c256_44] : memref<2x16x384xbf16, #tpu.memory_space<vmem>>, vector<2x1x128xbf16>
    tpu.vector_store %arg12[%c0_42, %c15_43, %c256_44], %42 {strides = array<i32>} : memref<2x16x384xbf16, #tpu.memory_space<vmem>>, vector<2x1x128xbf16>,
    %50 = vector.shape_cast %0 : vector<2x16x64xbf16> to vector<32x64xbf16>
    %c0_45 = arith.constant 0 : index
    %c0_46 = arith.constant 0 : index
    %51 = vector.load %arg1[%c0_45, %c0_46] : memref<64x128xbf16, #tpu.memory_space<vmem>>, vector<64x128xbf16>
    %cst_47 = arith.constant dense<0.000000e+00> : vector<32x128xf32>
    %52 = tpu.matmul %50, %51, %cst_47 {dimension_numbers = #tpu.dot_dimension_numbers<[1], [0], [0], [1], [0, 0, 1, 1], [], []>} : vector<32x64xbf16>, vector<64x128xbf16>, vector<32x128xf32> -> vector<32x128xf32>
    %c0_48 = arith.constant 0 : index
    %c0_49 = arith.constant 0 : index
    %c0_50 = arith.constant 0 : index
    %53 = vector.load %arg12[%c0_48, %c0_49, %c0_50] : memref<2x16x384xbf16, #tpu.memory_space<vmem>>, vector<2x16x384xbf16>
    %54 = vector.shape_cast %53 : vector<2x16x384xbf16> to vector<32x384xbf16>
    %c0_51 = arith.constant 0 : index
    %c0_52 = arith.constant 0 : index
    %55 = vector.load %arg6[%c0_51, %c0_52] : memref<384x128xbf16, #tpu.memory_space<vmem>>, vector<384x128xbf16>
    %cst_53 = arith.constant dense<0.000000e+00> : vector<32x128xf32>
    %56 = tpu.matmul %54, %55, %cst_53 {dimension_numbers = #tpu.dot_dimension_numbers<[1], [0], [0], [1], [0, 0, 1, 1], [], []>} : vector<32x384xbf16>, vector<384x128xbf16>, vector<32x128xf32> -> vector<32x128xf32>
    %57 = arith.addf %56, %52 : vector<32x128xf32>
    %cst_54 = arith.constant dense<0.000000e+00> : vector<128xf32>
    %58 = vector.multi_reduction <add>, %57, %cst_54 [0] : vector<32x128xf32> to vector<128xf32>
    %59 = vector.shape_cast %58 : vector<128xf32> to vector<1x128xf32>
    %60 = arith.mulf %57, %57 : vector<32x128xf32>
    %cst_55 = arith.constant dense<0.000000e+00> : vector<128xf32>
    %61 = vector.multi_reduction <add>, %60, %cst_55 [0] : vector<32x128xf32> to vector<128xf32>
    %62 = vector.shape_cast %61 : vector<128xf32> to vector<1x128xf32>
    %63 = tpu.concatenate %59, %62 in 0 : vector<1x128xf32>, vector<1x128xf32> -> vector<2x128xf32>
    %c0_56 = arith.constant 0 : index
    %c0_57 = arith.constant 0 : index
    %64 = vector.load %arg7[%c0_56, %c0_57] : memref<128x128xf32, #tpu.memory_space<vmem>>, vector<128x128xf32>
    %cst_58 = arith.constant dense<0.000000e+00> : vector<2x128xf32>
    %65 = tpu.matmul %63, %64, %cst_58 {dimension_numbers = #tpu.dot_dimension_numbers<[1], [0], [0], [1], [0, 0, 1, 1], [], []>} : vector<2x128xf32>, vector<128x128xf32>, vector<2x128xf32> -> vector<2x128xf32>
    %66 = vector.extract_strided_slice %65 {offsets = [0, 0], sizes = [1, 128], strides = [1, 1]} : vector<2x128xf32> to vector<1x128xf32>
    %67 = vector.extract_strided_slice %65 {offsets = [1, 0], sizes = [1, 128], strides = [1, 1]} : vector<2x128xf32> to vector<1x128xf32>
    %68 = arith.mulf %66, %66 : vector<1x128xf32>
    %69 = arith.subf %67, %68 : vector<1x128xf32>
    %c0_59 = arith.constant 0 : index
    %c0_60 = arith.constant 0 : index
    %70 = vector.load %arg8[%c0_59, %c0_60] : memref<1x128xf32, #tpu.memory_space<vmem>>, vector<1x128xf32>
    %cst_61 = arith.constant 9.99999974E-6 : f32
    %71 = vector.broadcast %cst_61 : f32 to vector<1x128xf32>
    %72 = arith.addf %69, %71 : vector<1x128xf32>
    %73 = math.rsqrt %72 : vector<1x128xf32>
    %74 = arith.mulf %70, %73 : vector<1x128xf32>
    %c0_62 = arith.constant 0 : index
    %c0_63 = arith.constant 0 : index
    %75 = vector.load %arg9[%c0_62, %c0_63] : memref<1x128xf32, #tpu.memory_space<vmem>>, vector<1x128xf32>
    %76 = arith.mulf %66, %74 : vector<1x128xf32>
    %77 = arith.subf %75, %76 : vector<1x128xf32>
    %78 = vector.broadcast %74 : vector<1x128xf32> to vector<32x128xf32>
    %79 = arith.mulf %57, %78 : vector<32x128xf32>
    %80 = vector.broadcast %77 : vector<1x128xf32> to vector<32x128xf32>
    %81 = arith.addf %79, %80 : vector<32x128xf32>
    %cst_64 = arith.constant 2.000000e-01 : f32
    %82 = vector.broadcast %cst_64 : f32 to vector<32x128xf32>
    %83 = arith.mulf %82, %81 : vector<32x128xf32>
    %84 = arith.maximumf %81, %83 : vector<32x128xf32>
    %c0_65 = arith.constant 0 : index
    %c0_66 = arith.constant 0 : index
    %85 = vector.load %arg10[%c0_65, %c0_66] : memref<32x128xf32, #tpu.memory_space<vmem>>, vector<32x128xf32>
    tpu.vector_store %arg10[%c0_65, %c0_66], %84 {strides = array<i32>} : memref<32x128xf32, #tpu.memory_space<vmem>>, vector<32x128xf32>,
    return
  }
}

</mosaic_0001>

<llo_original>
// kernel: tile.23
$region0: #{tile.23}
  #allocation0 [shape = 's32[1]{0}', space=sflag, size = 0x4, scoped, tag = 'scoped memory for tile.23']
  %s0 = inlined_call_operand.vmem [shape: f32[8], index: 0, kind: input, shape index: {}]
  %s1 = inlined_call_operand.vmem [shape: f32[16,8], index: 1, kind: output, shape index: {}]
  // Predicated region
  $region2: #{tile.23} parent=0 // pred_check
    _
  $region3: #{tile.23} parent=0 // pred_check_branch
    %3 = sbr.rel (0) target = $region5
  $region4: #{tile.23} parent=0 // pred_region
    _
  $region5: #{tile.23} parent=0 // pred_fallthru
    _
  %v4 = vld [vmem:[%s0] ss:$0 sm:$0xff]
  %5 = vst [vmem:[%s1] sm:$0xff] %v4
  %s6 = scalar_lea.vmem %s1, 8
  %7 = vst [vmem:[%s6] sm:$0xff] %v4

// kernel: tile.24
$region0: #{tile.24}
  %s0 = inlined_call_operand.vmem [shape: f32[16,8], index: 0, kind: input, shape index: {}]
  %s1 = inlined_call_operand.vmem [shape: f32[1,128], index: 1, kind: output, shape index: {}]
  $region1: #{tile.24} parent=0
    #allocation0 [shape = 'u8[4096]{0}', space=vmem, size = 0x1000, scoped, tag = 'scoped mem for output reshape']
    %v2 = vld [vmem:[%s0] sm:$0x1]
    %vm3 = vcmask 64512
    %4 = vst.msk [vmem:[#allocation0] sm:$0x1] %vm3, %v2
    %s5 = scalar_lea.vmem %s0, 15
    %v6 = vld [vmem:[%s5] sm:$0x1]
    %7 = vrot.lane.b32.xlu0 %v6, 120
    %v8 = vpop.permute.xlu0 %7
    %vm9 = vcmask 1048512
    %10 = vst.msk [vmem:[#allocation0] sm:$0x1] %vm9, %v8
    %s11 = scalar_lea.vmem %s0, 14
    %v12 = vld [vmem:[%s11] sm:$0x1]
    %13 = vrot.lane.b32.xlu0 %v12, 112
    %v14 = vpop.permute.xlu0 %13
    %vm15 = vcmask 982912
    %16 = vst.msk [vmem:[#allocation0] sm:$0x1] %vm15, %v14
    %s17 = scalar_lea.vmem %s0, 13
    %v18 = vld [vmem:[%s17] sm:$0x1]
    %19 = vrot.lane.b32.xlu0 %v18, 104
    %v20 = vpop.permute.xlu0 %19
    %vm21 = vcmask 917312
    %22 = vst.msk [vmem:[#allocation0] sm:$0x1] %vm21, %v20
    %s23 = scalar_lea.vmem %s0, 12
    %v24 = vld [vmem:[%s23] sm:$0x1]
    %25 = vrot.lane.b32.xlu0 %v24, 96
    %v26 = vpop.permute.xlu0 %25
    %vm27 = vcmask 851712
    %28 = vst.msk [vmem:[#allocation0] sm:$0x1] %vm27, %v26
    %s29 = scalar_lea.vmem %s0, 11
    %v30 = vld [vmem:[%s29] sm:$0x1]
    %31 = vrot.lane.b32.xlu0 %v30, 88
    %v32 = vpop.permute.xlu0 %31
    %vm33 = vcmask 786112
    %34 = vst.msk [vmem:[#allocation0] sm:$0x1] %vm33, %v32
    %s35 = scalar_lea.vmem %s0, 10
    %v36 = vld [vmem:[%s35] sm:$0x1]
    %37 = vrot.lane.b32.xlu0 %v36, 80
    %v38 = vpop.permute.xlu0 %37
    %vm39 = vcmask 720512
    %40 = vst.msk [vmem:[#allocation0] sm:$0x1] %vm39, %v38
    %s41 = scalar_lea.vmem %s0, 9
    %v42 = vld [vmem:[%s41] sm:$0x1]
    %43 = vrot.lane.b32.xlu0 %v42, 72
    %v44 = vpop.permute.xlu0 %43
    %vm45 = vcmask 654912
    %46 = vst.msk [vmem:[#allocation0] sm:$0x1] %vm45, %v44
    %s47 = scalar_lea.vmem %s0, 8
    %v48 = vld [vmem:[%s47] sm:$0x1]
    %49 = vrot.lane.b32.xlu0 %v48, 64
    %v50 = vpop.permute.xlu0 %49
    %vm51 = vcmask 589312
    %52 = vst.msk [vmem:[#allocation0] sm:$0x1] %vm51, %v50
    %s53 = scalar_lea.vmem %s0, 7
    %v54 = vld [vmem:[%s53] sm:$0x1]
    %55 = vrot.lane.b32.xlu0 %v54, 56
    %v56 = vpop.permute.xlu0 %55
    %vm57 = vcmask 523712
    %58 = vst.msk [vmem:[#allocation0] sm:$0x1] %vm57, %v56
    %s59 = scalar_lea.vmem %s0, 6
    %v60 = vld [vmem:[%s59] sm:$0x1]
    %61 = vrot.lane.b32.xlu0 %v60, 48
    %v62 = vpop.permute.xlu0 %61
    %vm63 = vcmask 458112
    %64 = vst.msk [vmem:[#allocation0] sm:$0x1] %vm63, %v62
    %s65 = scalar_lea.vmem %s0, 5
    %v66 = vld [vmem:[%s65] sm:$0x1]
    %67 = vrot.lane.b32.xlu0 %v66, 40
    %v68 = vpop.permute.xlu0 %67
    %vm69 = vcmask 392512
    %70 = vst.msk [vmem:[#allocation0] sm:$0x1] %vm69, %v68
    %s71 = scalar_lea.vmem %s0, 4
    %v72 = vld [vmem:[%s71] sm:$0x1]
    %73 = vrot.lane.b32.xlu0 %v72, 32
    %v74 = vpop.permute.xlu0 %73
    %vm75 = vcmask 326912
    %76 = vst.msk [vmem:[#allocation0] sm:$0x1] %vm75, %v74
    %s77 = scalar_lea.vmem %s0, 3
    %v78 = vld [vmem:[%s77] sm:$0x1]
    %79 = vrot.lane.b32.xlu0 %v78, 24
    %v80 = vpop.permute.xlu0 %79
    %vm81 = vcmask 261312
    %82 = vst.msk [vmem:[#allocation0] sm:$0x1] %vm81, %v80
    %s83 = scalar_lea.vmem %s0, 2
    %v84 = vld [vmem:[%s83] sm:$0x1]
    %85 = vrot.lane.b32.xlu0 %v84, 16
    %v86 = vpop.permute.xlu0 %85
    %vm87 = vcmask 195712
    %88 = vst.msk [vmem:[#allocation0] sm:$0x1] %vm87, %v86
    %s89 = scalar_lea.vmem %s0, 1
    %v90 = vld [vmem:[%s89] sm:$0x1]
    %91 = vrot.lane.b32.xlu0 %v90, 8
    %v92 = vpop.permute.xlu0 %91
    %vm93 = vcmask 130112
    %94 = vst.msk [vmem:[#allocation0] sm:$0x1] %vm93, %v92
    %s96 = sshll.u32 1, 1
    %s97 = ssub.s32 %s96, 1
    %v99 = vld [vmem:[#allocation0] sm:%s97]
    %s100 = sshll.u32 1, 1
    %s101 = ssub.s32 %s100, 1
    %102 = vst [vmem:[%s1] sm:%s101] %v99

// kernel: residual_block.1
$region0: #{residual_block.1}
  #allocation0 [shape = 'u32[]', space=smem, size = 0x4, offset = 0x4, fixed_abs, tag = 'smem constant byte address 0x4 - core index']
  #allocation1 [shape = 'u32[144,128]{1,0:T(1,128)}', space=vmem, size = 0x12000, scoped, tag = 'internal scratch']
  #allocation2 [shape = 'bf16[2,16,192]{2,1,0:T(8,128)(2,1)}', space=vmem, size = 0x4000, scoped, tag = 'scratch operand']
  #allocation3 [shape = 'bf16[2,16,384]{2,1,0:T(8,128)(2,1)}', space=vmem, size = 0x6000, scoped, tag = 'scratch operand']
  %s0 = inlined_call_operand.vmem [shape: bf16[2,16,64], index: 0, kind: input, shape index: {}]
  %s1 = inlined_call_operand.vmem [shape: bf16[64,128], index: 1, kind: input, shape index: {}]
  %s2 = inlined_call_operand.vmem [shape: bf16[192,128], index: 2, kind: input, shape index: {}]
  %s3 = inlined_call_operand.vmem [shape: f32[128,128], index: 3, kind: input, shape index: {}, may-alias: {3,7}]
  %s4 = inlined_call_operand.vmem [shape: f32[1,128], index: 4, kind: input, shape index: {}]
  %s5 = inlined_call_operand.vmem [shape: f32[1,128], index: 5, kind: input, shape index: {}]
  %s6 = inlined_call_operand.vmem [shape: bf16[384,128], index: 6, kind: input, shape index: {}]
  %s7 = inlined_call_operand.vmem [shape: f32[128,128], index: 7, kind: input, shape index: {}, may-alias: {3,7}]
  %s8 = inlined_call_operand.vmem [shape: f32[1,128], index: 8, kind: input, shape index: {}]
  %s9 = inlined_call_operand.vmem [shape: f32[1,128], index: 9, kind: input, shape index: {}]
  %s10 = inlined_call_operand.vmem [shape: f32[32,128], index: 10, kind: output, shape index: {}]
  %s11 = sld [smem:[#allocation0]]
  $region50: #{residual_block.1} parent=0
    _
  %s13 = ssub.s32 1, %s11
  %s14 = scalar_select 0, %s13, %s11
  // Predicated region
  $region2: #{residual_block.1} parent=0 // pred_check
    _
  $region3: #{residual_block.1} parent=0 // pred_check_branch
    %16 = sbr.rel (0) target = $region5
  $region4: #{residual_block.1} parent=0 // pred_region
    _
  $region5: #{residual_block.1} parent=0 // pred_fallthru
    _
  // Predicated region
  $region6: #{residual_block.1} parent=0 // pred_check
    _
  $region7: #{residual_block.1} parent=0 // pred_check_branch
    %18 = sbr.rel (0) target = $region9
  $region8: #{residual_block.1} parent=0 // pred_region
    _
  $region9: #{residual_block.1} parent=0 // pred_fallthru
    _
  // Predicated region
  $region10: #{residual_block.1} parent=0 // pred_check
    _
  $region11: #{residual_block.1} parent=0 // pred_check_branch
    %20 = sbr.rel (0) target = $region13
  $region12: #{residual_block.1} parent=0 // pred_region
    _
  $region13: #{residual_block.1} parent=0 // pred_fallthru
    _
  // Predicated region
  $region14: #{residual_block.1} parent=0 // pred_check
    _
  $region15: #{residual_block.1} parent=0 // pred_check_branch
    %22 = sbr.rel (0) target = $region17
  $region16: #{residual_block.1} parent=0 // pred_region
    _
  $region17: #{residual_block.1} parent=0 // pred_fallthru
    _
  // Predicated region
  $region18: #{residual_block.1} parent=0 // pred_check
    _
  $region19: #{residual_block.1} parent=0 // pred_check_branch
    %24 = sbr.rel (0) target = $region21
  $region20: #{residual_block.1} parent=0 // pred_region
    _
  $region21: #{residual_block.1} parent=0 // pred_fallthru
    _
  // Predicated region
  $region22: #{residual_block.1} parent=0 // pred_check
    _
  $region23: #{residual_block.1} parent=0 // pred_check_branch
    %26 = sbr.rel (0) target = $region25
  $region24: #{residual_block.1} parent=0 // pred_region
    _
  $region25: #{residual_block.1} parent=0 // pred_fallthru
    _
  // Predicated region
  $region26: #{residual_block.1} parent=0 // pred_check
    _
  $region27: #{residual_block.1} parent=0 // pred_check_branch
    %28 = sbr.rel (0) target = $region29
  $region28: #{residual_block.1} parent=0 // pred_region
    _
  $region29: #{residual_block.1} parent=0 // pred_fallthru
    _
  // Predicated region
  $region30: #{residual_block.1} parent=0 // pred_check
    _
  $region31: #{residual_block.1} parent=0 // pred_check_branch
    %30 = sbr.rel (0) target = $region33
  $region32: #{residual_block.1} parent=0 // pred_region
    _
  $region33: #{residual_block.1} parent=0 // pred_fallthru
    _
  // Predicated region
  $region34: #{residual_block.1} parent=0 // pred_check
    _
  $region35: #{residual_block.1} parent=0 // pred_check_branch
    %32 = sbr.rel (0) target = $region37
  $region36: #{residual_block.1} parent=0 // pred_region
    _
  $region37: #{residual_block.1} parent=0 // pred_fallthru
    _
  // Predicated region
  $region38: #{residual_block.1} parent=0 // pred_check
    _
  $region39: #{residual_block.1} parent=0 // pred_check_branch
    %34 = sbr.rel (0) target = $region41
  $region40: #{residual_block.1} parent=0 // pred_region
    _
  $region41: #{residual_block.1} parent=0 // pred_fallthru
    _
  %v36 = vld [vmem:[%s0] sm:$0xf]
  %v37 = vld [vmem:[%s0 + $0x4] sm:$0xf]
  %v38 = vld [vmem:[%s0 + $0x8] sm:$0xf]
  %v39 = vld [vmem:[%s0 + $0xc] sm:$0xf]
  %44 = vrot.lane.b32.xlu0 %v36, 64
  %v45 = vpop.permute.xlu0 %44
  %46 = vrot.lane.b32.xlu0 %v37, 64
  %v47 = vpop.permute.xlu0 %46
  %48 = vrot.lane.b32.xlu0 %v38, 64
  %v49 = vpop.permute.xlu0 %48
  %50 = vrot.lane.b32.xlu0 %v39, 64
  %v51 = vpop.permute.xlu0 %50
  %vm56 = vcmask 1043968
  %57 = vst.msk [vmem:[#allocation2] sm:$0xf] %vm56, %v45
  %58 = vst.msk [vmem:[#allocation2 + $0x8] sm:$0xf] %vm56, %v47
  %59 = vst.msk [vmem:[#allocation2 + $0x10] sm:$0xf] %vm56, %v49
  %60 = vst.msk [vmem:[#allocation2 + $0x18] sm:$0xf] %vm56, %v51
  %vm61 = vsmask.f32 256
  %vm62 = vsmask.f32 4368
  %vm63 = vmor %vm61, %vm62
  %v65 = vshrl.u32 %v36, 16
  %v67 = vrot.slane %v65, 7
  %v68 = vshll.u32 %v36, 16
  %v70 = vor.u32 %v67, %v68
  %v71 = vrot.slane %v67, 4
  %v73 = vshrl.u32 %v37, 16
  %v75 = vrot.slane %v73, 7
  %v76 = vshll.u32 %v37, 16
  %v78 = vor.u32 %v75, %v76
  %v79 = vsel %vm63, %v71, %v78
  %v81 = vshrl.u32 %v38, 16
  %v83 = vrot.slane %v81, 7
  %v84 = vshll.u32 %v38, 16
  %v86 = vor.u32 %v83, %v84
  %v87 = vrot.slane %v83, 4
  %v89 = vshrl.u32 %v39, 16
  %v91 = vrot.slane %v89, 7
  %v92 = vshll.u32 %v39, 16
  %v94 = vor.u32 %v91, %v92
  %v95 = vsel %vm63, %v87, %v94
  %vm100 = vcmask 519168
  %vm101 = vsmask.f32 7938
  %vm102 = vmand %vm100, %vm101
  %v103 = vld [vmem:[#allocation2] sm:$0xf]
  %v104 = vsel %vm102, %v70, %v103
  %105 = vst [vmem:[#allocation2] sm:$0xf] %v104
  %vm106 = vcmask 519168
  %107 = vst.msk [vmem:[#allocation2 + $0x8] sm:$0xf] %vm106, %v79
  %v108 = vld [vmem:[#allocation2 + $0x10] sm:$0xf]
  %v109 = vsel %vm102, %v86, %v108
  %110 = vst [vmem:[#allocation2 + $0x10] sm:$0xf] %v109
  %111 = vst.msk [vmem:[#allocation2 + $0x18] sm:$0xf] %vm106, %v95
  %vm112 = vcmask 516096
  %vm113 = vmand %vm112, %vm61
  %v114 = vld [vmem:[#allocation2] sm:$0x1]
  %v115 = vsel %vm113, 0, %v114
  %116 = vst [vmem:[#allocation2] sm:$0x1] %v115
  %v117 = vld [vmem:[#allocation2 + $0x10] sm:$0x1]
  %v118 = vsel %vm113, 0, %v117
  %119 = vst [vmem:[#allocation2 + $0x10] sm:$0x1] %v118
  %vm120 = vsmask.f32 3328
  %vm121 = vsmask.f32 7440
  %vm122 = vmor %vm120, %vm121
  %v123 = vrot.slane %v65, 4
  %v124 = vrot.slane %v68, 5
  %v125 = vor.u32 %v123, %v124
  %v126 = vrot.slane %v125, 4
  %v127 = vrot.slane %v76, 5
  %v128 = vsel %vm122, %v126, %v127
  %v129 = vrot.slane %v73, 4
  %v130 = vor.u32 %v129, %v127
  %v131 = vrot.slane %v130, 4
  %v132 = vrot.slane %v81, 4
  %v133 = vrot.slane %v84, 5
  %v134 = vor.u32 %v132, %v133
  %v135 = vrot.slane %v134, 4
  %v136 = vrot.slane %v92, 5
  %v137 = vsel %vm122, %v135, %v136
  %v138 = vrot.slane %v89, 4
  %v139 = vor.u32 %v138, %v136
  %v140 = vrot.slane %v139, 4
  %145 = vst.msk [vmem:[#allocation2 + $0x4] sm:$0xf] %vm106, %v128
  %vm146 = vmand %vm100, %vm120
  %v147 = vld [vmem:[#allocation2 + $0xc] sm:$0xf]
  %v148 = vsel %vm146, %v131, %v147
  %149 = vst [vmem:[#allocation2 + $0xc] sm:$0xf] %v148
  %150 = vst.msk [vmem:[#allocation2 + $0x14] sm:$0xf] %vm106, %v137
  %v151 = vld [vmem:[#allocation2 + $0x1c] sm:$0xf]
  %v152 = vsel %vm146, %v140, %v151
  %153 = vst [vmem:[#allocation2 + $0x1c] sm:$0xf] %v152
  %vm154 = vcmask 519171
  %vm155 = vsmask.f32 7950
  %vm156 = vmand %vm154, %vm155
  %v157 = vld [vmem:[#allocation2 + $0xc] sm:$0x8]
  %v158 = vsel %vm156, 0, %v157
  %159 = vst [vmem:[#allocation2 + $0xc] sm:$0x8] %v158
  %v160 = vld [vmem:[#allocation2 + $0x1c] sm:$0x8]
  %v161 = vsel %vm156, 0, %v160
  %162 = vst [vmem:[#allocation2 + $0x1c] sm:$0x8] %v161
  %v163 = vld [vmem:[#allocation2] sm:$0xff]
  %v164 = vld [vmem:[#allocation2 + $0x8] sm:$0xff]
  %v165 = vld [vmem:[#allocation2 + $0x10] sm:$0xff]
  %v166 = vld [vmem:[#allocation2 + $0x18] sm:$0xff]
  %v167 = vld [vmem:[%s2] sm:$0xf]
  %v168 = vld [vmem:[%s2 + $0x4] sm:$0xf]
  %v169 = vld [vmem:[%s2 + $0x8] sm:$0xf]
  %v170 = vld [vmem:[%s2 + $0xc] sm:$0xf]
  %v171 = vld [vmem:[%s2 + $0x10] sm:$0xf]
  %v172 = vld [vmem:[%s2 + $0x14] sm:$0xf]
  %v173 = vld [vmem:[%s2 + $0x18] sm:$0xf]
  %v174 = vld [vmem:[%s2 + $0x1c] sm:$0xf]
  %v175 = vld [vmem:[%s2 + $0x20] sm:$0xf]
  %v176 = vld [vmem:[%s2 + $0x24] sm:$0xf]
  %v177 = vld [vmem:[%s2 + $0x28] sm:$0xf]
  %v178 = vld [vmem:[%s2 + $0x2c] sm:$0xf]
  %v179 = vld [vmem:[%s2 + $0x30] sm:$0xf]
  %v180 = vld [vmem:[%s2 + $0x34] sm:$0xf]
  %v181 = vld [vmem:[%s2 + $0x38] sm:$0xf]
  %v182 = vld [vmem:[%s2 + $0x3c] sm:$0xf]
  %v183 = vld [vmem:[%s2 + $0x40] sm:$0xf]
  %v184 = vld [vmem:[%s2 + $0x44] sm:$0xf]
  %v185 = vld [vmem:[%s2 + $0x48] sm:$0xf]
  %v186 = vld [vmem:[%s2 + $0x4c] sm:$0xf]
  %v187 = vld [vmem:[%s2 + $0x50] sm:$0xf]
  %v188 = vld [vmem:[%s2 + $0x54] sm:$0xf]
  %v189 = vld [vmem:[%s2 + $0x58] sm:$0xf]
  %v190 = vld [vmem:[%s2 + $0x5c] sm:$0xf]
  %v195 = vunpack.c.l.b16 %v163
  %v196 = vunpack.c.h.b16 %v163
  %v197 = vunpack.c.l.b16 %v164
  %v198 = vunpack.c.h.b16 %v164
  %v199 = vunpack.c.l.b16 %v165
  %v200 = vunpack.c.h.b16 %v165
  %v201 = vunpack.c.l.b16 %v166
  %v202 = vunpack.c.h.b16 %v166
  %v203 = vpack.c.b16 %v197, %v195
  %v204 = vpack.c.b16 %v198, %v196
  %v205 = vpack.c.b16 %v201, %v199
  %v206 = vpack.c.b16 %v202, %v200
  %v233 = vunpack.c.l.b16 %v167
  %v234 = vunpack.c.l.b16 %v168
  %v235 = vunpack.c.l.b16 %v169
  %v236 = vunpack.c.l.b16 %v170
  %v237 = vunpack.c.l.b16 %v171
  %v238 = vunpack.c.l.b16 %v172
  %v239 = vunpack.c.l.b16 %v173
  %v240 = vunpack.c.l.b16 %v174
  %v241 = vunpack.c.l.b16 %v175
  %v242 = vunpack.c.l.b16 %v176
  %v243 = vunpack.c.l.b16 %v177
  %v244 = vunpack.c.l.b16 %v178
  %v245 = vunpack.c.l.b16 %v179
  %v246 = vunpack.c.l.b16 %v180
  %v247 = vunpack.c.l.b16 %v181
  %v248 = vunpack.c.l.b16 %v182
  %v249 = vunpack.c.l.b16 %v183
  %v250 = vunpack.c.l.b16 %v184
  %v251 = vunpack.c.l.b16 %v185
  %v252 = vunpack.c.l.b16 %v186
  %v253 = vunpack.c.l.b16 %v187
  %v254 = vunpack.c.l.b16 %v188
  %v255 = vunpack.c.l.b16 %v189
  %v256 = vunpack.c.l.b16 %v190
  %v257 = vpack.c.b16 %v234, %v233
  %v258 = vpack.c.b16 %v236, %v235
  %v259 = vpack.c.b16 %v238, %v237
  %v260 = vpack.c.b16 %v240, %v239
  %v261 = vpack.c.b16 %v242, %v241
  %v262 = vpack.c.b16 %v244, %v243
  %v263 = vpack.c.b16 %v246, %v245
  %v264 = vpack.c.b16 %v248, %v247
  %v265 = vpack.c.b16 %v250, %v249
  %v266 = vpack.c.b16 %v252, %v251
  %v267 = vpack.c.b16 %v254, %v253
  %v268 = vpack.c.b16 %v256, %v255
  %vm281 = vcmask 523264
  %v283 = vsel %vm281, %v204, 0
  %v286 = vsel %vm281, %v206, 0
  %288 = vmatprep.subr.bf16.mxu0 0
  %289 = vmatpush1.bf16.msra.mxu0 %v264
  %290 = vmatprep.subr.bf16.mxu0 0
  %291 = vmatpush1.bf16.msra.mxu0 %v263
  %292 = vmatprep.subr.bf16.mxu0 0
  %293 = vmatpush1.bf16.msra.mxu0 %v262
  %294 = vmatprep.subr.bf16.mxu0 0
  %295 = vmatpush1.bf16.msra.mxu0 %v261
  %296 = vmatprep.subr.bf16.mxu0 0
  %297 = vmatpush1.bf16.msra.mxu0 %v260
  %298 = vmatprep.subr.bf16.mxu0 0
  %299 = vmatpush1.bf16.msra.mxu0 %v259
  %300 = vmatprep.subr.bf16.mxu0 0
  %301 = vmatpush1.bf16.msra.mxu0 %v258
  %302 = vmatprep.subr.bf16.mxu0 0
  %303 = vmatpush1.bf16.msra.mxu0 %v257
  %304 = vmatprep.subr.bf16.mxu0 0
  %305 = vmatpush2.bf16.msra.mxu0 0
  %306 = vmatprep.subr.bf16.mxu0 0
  %307 = vmatpush2.bf16.msra.mxu0 0
  %308 = vmatprep.subr.bf16.mxu0 0
  %309 = vmatpush2.bf16.msra.mxu0 0
  %310 = vmatprep.subr.bf16.mxu0 0
  %311 = vmatpush2.bf16.msra.mxu0 0
  %312 = vmatprep.subr.bf16.mxu0 0
  %313 = vmatpush2.bf16.msra.mxu0 %v268
  %314 = vmatprep.subr.bf16.mxu0 0
  %315 = vmatpush2.bf16.msra.mxu0 %v267
  %316 = vmatprep.subr.bf16.mxu0 0
  %317 = vmatpush2.bf16.msra.mxu0 %v266
  %318 = vmatprep.subr.bf16.mxu0 0
  %319 = vmatpush2.bf16.msra.mxu0 %v265
  %320 = vmatprep.mubr.bf16.mxu0 %v283
  %321 = vmatmul.mubr.bf16.gmra.mxu0 %v203
  %v322 = vpop.f32.mrf.mxu0
  %v323 = vadd.f32 0.0, %v322
  %v324 = vpop.f32.mrf.mxu0
  %v325 = vpop.f32.mrf.mxu0
  %v326 = vadd.f32 0.0, %v325
  %v327 = vpop.f32.mrf.mxu0
  %328 = vmatprep.mubr.bf16.mxu0 %v286
  %329 = vmatmul.mubr.bf16.gmra.mxu0 %v205
  %v330 = vpop.f32.mrf.mxu0
  %v331 = vadd.f32 0.0, %v330
  %v332 = vpop.f32.mrf.mxu0
  %v333 = vpop.f32.mrf.mxu0
  %v334 = vadd.f32 0.0, %v333
  %v335 = vpop.f32.mrf.mxu0
  %336 = vdwg.mxu0
  %v337 = vadd.f32 %v323, %v326
  %v338 = vadd.f32 %v337, %v331
  %v339 = vadd.f32 %v338, %v334
  %v340 = vrot.slane %v339, 4
  %v341 = vadd.f32 %v339, %v340
  %v342 = vrot.slane %v341, 2
  %v343 = vadd.f32 %v341, %v342
  %v344 = vrot.slane %v343, 1
  %v345 = vadd.f32 %v343, %v344
  %v346 = vmul.f32 %v323, %v323
  %v347 = vmul.f32 %v326, %v326
  %v348 = vmul.f32 %v331, %v331
  %v349 = vmul.f32 %v334, %v334
  %v350 = vadd.f32 %v346, %v347
  %v351 = vadd.f32 %v350, %v348
  %v352 = vadd.f32 %v351, %v349
  %v353 = vrot.slane %v352, 4
  %v354 = vadd.f32 %v352, %v353
  %v355 = vrot.slane %v354, 2
  %v356 = vadd.f32 %v354, %v355
  %v357 = vrot.slane %v356, 1
  %v358 = vadd.f32 %v356, %v357
  %vm359 = vcmask 1040384
  %v360 = vsel %vm359, %v345, %v358
  %v361 = vld [vmem:[%s3] sm:$0xff]
  %v362 = vld [vmem:[%s3 + $0x8] sm:$0xff]
  %v363 = vld [vmem:[%s3 + $0x10] sm:$0xff]
  %v364 = vld [vmem:[%s3 + $0x18] sm:$0xff]
  %v365 = vld [vmem:[%s3 + $0x20] sm:$0xff]
  %v366 = vld [vmem:[%s3 + $0x28] sm:$0xff]
  %v367 = vld [vmem:[%s3 + $0x30] sm:$0xff]
  %v368 = vld [vmem:[%s3 + $0x38] sm:$0xff]
  %v369 = vld [vmem:[%s3 + $0x40] sm:$0xff]
  %v370 = vld [vmem:[%s3 + $0x48] sm:$0xff]
  %v371 = vld [vmem:[%s3 + $0x50] sm:$0xff]
  %v372 = vld [vmem:[%s3 + $0x58] sm:$0xff]
  %v373 = vld [vmem:[%s3 + $0x60] sm:$0xff]
  %v374 = vld [vmem:[%s3 + $0x68] sm:$0xff]
  %v375 = vld [vmem:[%s3 + $0x70] sm:$0xff]
  %v376 = vld [vmem:[%s3 + $0x78] sm:$0xff]
  %377 = vmatprep.subr.mxu0 0.0
  %378 = vmatpush1.msra.mxu0 %v376
  %379 = vmatprep.subr.mxu0 0.0
  %380 = vmatpush1.msra.mxu0 %v375
  %381 = vmatprep.subr.mxu0 0.0
  %382 = vmatpush1.msra.mxu0 %v374
  %383 = vmatprep.subr.mxu0 0.0
  %384 = vmatpush1.msra.mxu0 %v373
  %385 = vmatprep.subr.mxu0 0.0
  %386 = vmatpush1.msra.mxu0 %v372
  %387 = vmatprep.subr.mxu0 0.0
  %388 = vmatpush1.msra.mxu0 %v371
  %389 = vmatprep.subr.mxu0 0.0
  %390 = vmatpush1.msra.mxu0 %v370
  %391 = vmatprep.subr.mxu0 0.0
  %392 = vmatpush1.msra.mxu0 %v369
  %393 = vmatprep.subr.mxu0 0.0
  %394 = vmatpush1.msra.mxu0 %v368
  %395 = vmatprep.subr.mxu0 0.0
  %396 = vmatpush1.msra.mxu0 %v367
  %397 = vmatprep.subr.mxu0 0.0
  %398 = vmatpush1.msra.mxu0 %v366
  %399 = vmatprep.subr.mxu0 0.0
  %400 = vmatpush1.msra.mxu0 %v365
  %401 = vmatprep.subr.mxu0 0.0
  %402 = vmatpush1.msra.mxu0 %v364
  %403 = vmatprep.subr.mxu0 0.0
  %404 = vmatpush1.msra.mxu0 %v363
  %405 = vmatprep.subr.mxu0 0.0
  %406 = vmatpush1.msra.mxu0 %v362
  %407 = vmatprep.subr.mxu0 0.0
  %408 = vmatpush1.msra.mxu0 %v361
  %409 = vmatprep.subr.mxu0 0.0
  %410 = vmatpush2.msra.mxu0 0.0
  %411 = vmatprep.subr.mxu0 0.0
  %412 = vmatpush2.msra.mxu0 0.0
  %413 = vmatprep.subr.mxu0 0.0
  %414 = vmatpush2.msra.mxu0 0.0
  %415 = vmatprep.subr.mxu0 0.0
  %416 = vmatpush2.msra.mxu0 0.0
  %417 = vmatprep.subr.mxu0 0.0
  %418 = vmatpush2.msra.mxu0 0.0
  %419 = vmatprep.subr.mxu0 0.0
  %420 = vmatpush2.msra.mxu0 0.0
  %421 = vmatprep.subr.mxu0 0.0
  %422 = vmatpush2.msra.mxu0 0.0
  %423 = vmatprep.subr.mxu0 0.0
  %424 = vmatpush2.msra.mxu0 0.0
  %425 = vmatprep.subr.mxu0 0.0
  %426 = vmatpush2.msra.mxu0 0.0
  %427 = vmatprep.subr.mxu0 0.0
  %428 = vmatpush2.msra.mxu0 0.0
  %429 = vmatprep.subr.mxu0 0.0
  %430 = vmatpush2.msra.mxu0 0.0
  %431 = vmatprep.subr.mxu0 0.0
  %432 = vmatpush2.msra.mxu0 0.0
  %433 = vmatprep.subr.mxu0 0.0
  %434 = vmatpush2.msra.mxu0 0.0
  %435 = vmatprep.subr.mxu0 0.0
  %436 = vmatpush2.msra.mxu0 0.0
  %437 = vmatprep.subr.mxu0 0.0
  %438 = vmatpush2.msra.mxu0 0.0
  %439 = vmatprep.subr.mxu0 0.0
  %440 = vmatpush2.msra.mxu0 0.0
  %441 = vmatprep.mubr.f32.mxu0 0.0
  %442 = vmatmul.mubr.f32.gmra.mxu0 %v360
  %v443 = vpop.f32.mrf.mxu0
  %v444 = vadd.f32 0.0, %v443
  %v445 = vpop.f32.mrf.mxu0
  %446 = vdwg.mxu0
  %v447 = vmul.f32 %v444, %v444
  %v449 = vrot.slane %v447, 7
  %v451 = vsub.f32 %v444, %v449
  %v452 = vld [vmem:[%s4] sm:$0x1]
  %v453 = vadd.f32 %v451, 1e-05
  %v454 = vrsqrt.pop %v453
  %v457 = vunpack.c.l.s4 1966171168
  %v458 = vunpack.c.0.s8 %v457
  %v459 = vlaneseq
  %v460 = vshrl.u32 %v459, 7
  %v461 = vsub.s32 %v458, %v460
  %v462 = vrot.slane %v454, %v461
  %v463 = vcombine.high %v462, %v462
  %v465 = vunpack.c.l.s4 1966171168
  %v466 = vunpack.c.0.s8 %v465
  %v467 = vlaneseq
  %v468 = vshrl.u32 %v467, 7
  %v469 = vsub.s32 %v466, %v468
  %v470 = vrot.slane %v463, %v469
  %v472 = vmul.f32 %v452, %v470
  %v473 = vld [vmem:[%s5] sm:$0x1]
  %v474 = vmul.f32 %v444, %v472
  %v475 = vsub.f32 %v473, %v474
  %v477 = vlaneseq
  %v478 = vshrl.u32 %v477, 7
  %v479 = vsub.s32 0, %v478
  %v480 = vrot.slane %v472, %v479
  %v482 = vmul.f32 %v323, %v480
  %v483 = vmul.f32 %v326, %v480
  %v484 = vmul.f32 %v331, %v480
  %v485 = vmul.f32 %v334, %v480
  %v487 = vlaneseq
  %v488 = vshrl.u32 %v487, 7
  %v489 = vsub.s32 0, %v488
  %v490 = vrot.slane %v475, %v489
  %v492 = vadd.f32 %v482, %v490
  %v493 = vadd.f32 %v483, %v490
  %v494 = vadd.f32 %v484, %v490
  %v495 = vadd.f32 %v485, %v490
  %v496 = vmul.f32 %v492, 0.2
  %v497 = vmul.f32 %v493, 0.2
  %v498 = vmul.f32 %v494, 0.2
  %v499 = vmul.f32 %v495, 0.2
  %v500 = vmax.f32 %v492, %v496
  %v501 = vmax.f32 %v493, %v497
  %v502 = vmax.f32 %v494, %v498
  %v503 = vmax.f32 %v495, %v499
  %v504 = vpack.c.bf16 %v501, %v500
  %v505 = vpack.c.bf16 %v503, %v502
  %v508 = vunpack.c.l.b16 %v504
  %v509 = vunpack.c.h.b16 %v504
  %v510 = vunpack.c.l.b16 %v505
  %v511 = vunpack.c.h.b16 %v505
  %v512 = vpack.c.b16 %v508, %v508
  %v513 = vpack.c.b16 %v509, %v509
  %v514 = vpack.c.b16 %v510, %v510
  %v515 = vpack.c.b16 %v511, %v511
  %520 = vst [vmem:[#allocation3 + $0x4] sm:$0xf] %v512
  %521 = vst [vmem:[#allocation3 + $0x10] sm:$0xf] %v513
  %522 = vst [vmem:[#allocation3 + $0x1c] sm:$0xf] %v514
  %523 = vst [vmem:[#allocation3 + $0x28] sm:$0xf] %v515
  %v525 = vshrl.u32 %v512, 16
  %v527 = vrot.slane %v525, 7
  %v528 = vshll.u32 %v512, 16
  %v530 = vor.u32 %v527, %v528
  %v531 = vrot.slane %v527, 4
  %v533 = vshrl.u32 %v513, 16
  %v535 = vrot.slane %v533, 7
  %v536 = vshll.u32 %v513, 16
  %v538 = vor.u32 %v535, %v536
  %v539 = vsel %vm63, %v531, %v538
  %v541 = vshrl.u32 %v514, 16
  %v543 = vrot.slane %v541, 7
  %v544 = vshll.u32 %v514, 16
  %v546 = vor.u32 %v543, %v544
  %v547 = vrot.slane %v543, 4
  %v549 = vshrl.u32 %v515, 16
  %v551 = vrot.slane %v549, 7
  %v552 = vshll.u32 %v515, 16
  %v554 = vor.u32 %v551, %v552
  %v555 = vsel %vm63, %v547, %v554
  %vm560 = vcmask 1043456
  %vm561 = vmand %vm560, %vm101
  %v562 = vld [vmem:[#allocation3] sm:$0xf]
  %v563 = vsel %vm561, %v530, %v562
  %564 = vst [vmem:[#allocation3] sm:$0xf] %v563
  %565 = vst [vmem:[#allocation3 + $0xc] sm:$0xf] %v539
  %v566 = vld [vmem:[#allocation3 + $0x18] sm:$0xf]
  %v567 = vsel %vm561, %v546, %v566
  %568 = vst [vmem:[#allocation3 + $0x18] sm:$0xf] %v567
  %569 = vst [vmem:[#allocation3 + $0x24] sm:$0xf] %v555
  %vm570 = vcmask 1040384
  %vm571 = vmand %vm570, %vm61
  %v572 = vld [vmem:[#allocation3] sm:$0x1]
  %v573 = vsel %vm571, 0, %v572
  %574 = vst [vmem:[#allocation3] sm:$0x1] %v573
  %v575 = vld [vmem:[#allocation3 + $0x18] sm:$0x1]
  %v576 = vsel %vm571, 0, %v575
  %577 = vst [vmem:[#allocation3 + $0x18] sm:$0x1] %v576
  %v578 = vrot.slane %v525, 4
  %v579 = vrot.slane %v528, 5
  %v580 = vor.u32 %v578, %v579
  %v581 = vrot.slane %v580, 4
  %v582 = vrot.slane %v536, 5
  %v583 = vsel %vm122, %v581, %v582
  %v584 = vrot.slane %v533, 4
  %v585 = vor.u32 %v584, %v582
  %v586 = vrot.slane %v585, 4
  %v587 = vrot.slane %v541, 4
  %v588 = vrot.slane %v544, 5
  %v589 = vor.u32 %v587, %v588
  %v590 = vrot.slane %v589, 4
  %v591 = vrot.slane %v552, 5
  %v592 = vsel %vm122, %v590, %v591
  %v593 = vrot.slane %v549, 4
  %v594 = vor.u32 %v593, %v591
  %v595 = vrot.slane %v594, 4
  %600 = vst [vmem:[#allocation3 + $0x8] sm:$0xf] %v583
  %vm601 = vmand %vm560, %vm120
  %v602 = vld [vmem:[#allocation3 + $0x14] sm:$0xf]
  %v603 = vsel %vm601, %v586, %v602
  %604 = vst [vmem:[#allocation3 + $0x14] sm:$0xf] %v603
  %605 = vst [vmem:[#allocation3 + $0x20] sm:$0xf] %v592
  %v606 = vld [vmem:[#allocation3 + $0x2c] sm:$0xf]
  %v607 = vsel %vm601, %v595, %v606
  %608 = vst [vmem:[#allocation3 + $0x2c] sm:$0xf] %v607
  %vm609 = vcmask 1043459
  %vm610 = vmand %vm609, %vm155
  %v611 = vld [vmem:[#allocation3 + $0x14] sm:$0x8]
  %v612 = vsel %vm610, 0, %v611
  %613 = vst [vmem:[#allocation3 + $0x14] sm:$0x8] %v612
  %v614 = vld [vmem:[#allocation3 + $0x2c] sm:$0x8]
  %v615 = vsel %vm610, 0, %v614
  %616 = vst [vmem:[#allocation3 + $0x2c] sm:$0x8] %v615
  %v617 = vld [vmem:[%s1] sm:$0xf]
  %v618 = vld [vmem:[%s1 + $0x4] sm:$0xf]
  %v619 = vld [vmem:[%s1 + $0x8] sm:$0xf]
  %v620 = vld [vmem:[%s1 + $0xc] sm:$0xf]
  %v621 = vld [vmem:[%s1 + $0x10] sm:$0xf]
  %v622 = vld [vmem:[%s1 + $0x14] sm:$0xf]
  %v623 = vld [vmem:[%s1 + $0x18] sm:$0xf]
  %v624 = vld [vmem:[%s1 + $0x1c] sm:$0xf]
  %v625 = vunpack.c.l.b16 %v36
  %v626 = vunpack.c.l.b16 %v37
  %v627 = vunpack.c.l.b16 %v38
  %v628 = vunpack.c.l.b16 %v39
  %v629 = vpack.c.b16 %v626, %v625
  %v630 = vpack.c.b16 %v628, %v627
  %v639 = vunpack.c.l.b16 %v617
  %v640 = vunpack.c.l.b16 %v618
  %v641 = vunpack.c.l.b16 %v619
  %v642 = vunpack.c.l.b16 %v620
  %v643 = vunpack.c.l.b16 %v621
  %v644 = vunpack.c.l.b16 %v622
  %v645 = vunpack.c.l.b16 %v623
  %v646 = vunpack.c.l.b16 %v624
  %v647 = vpack.c.b16 %v640, %v639
  %v648 = vpack.c.b16 %v642, %v641
  %v649 = vpack.c.b16 %v644, %v643
  %v650 = vpack.c.b16 %v646, %v645
  %v656 = vsel %vm281, %v629, 0
  %v659 = vsel %vm281, %v630, 0
  %661 = vmatprep.subr.bf16.mxu0 0
  %662 = vmatpush1.bf16.msra.mxu0 0
  %663 = vmatprep.subr.bf16.mxu0 0
  %664 = vmatpush1.bf16.msra.mxu0 0
  %665 = vmatprep.subr.bf16.mxu0 0
  %666 = vmatpush1.bf16.msra.mxu0 0
  %667 = vmatprep.subr.bf16.mxu0 0
  %668 = vmatpush1.bf16.msra.mxu0 0
  %669 = vmatprep.subr.bf16.mxu0 0
  %670 = vmatpush1.bf16.msra.mxu0 %v650
  %671 = vmatprep.subr.bf16.mxu0 0
  %672 = vmatpush1.bf16.msra.mxu0 %v649
  %673 = vmatprep.subr.bf16.mxu0 0
  %674 = vmatpush1.bf16.msra.mxu0 %v648
  %675 = vmatprep.subr.bf16.mxu0 0
  %676 = vmatpush1.bf16.msra.mxu0 %v647
  %677 = vmatprep.subr.bf16.mxu0 0
  %678 = vmatpush2.bf16.msra.mxu0 0
  %679 = vmatprep.subr.bf16.mxu0 0
  %680 = vmatpush2.bf16.msra.mxu0 0
  %681 = vmatprep.subr.bf16.mxu0 0
  %682 = vmatpush2.bf16.msra.mxu0 0
  %683 = vmatprep.subr.bf16.mxu0 0
  %684 = vmatpush2.bf16.msra.mxu0 0
  %685 = vmatprep.subr.bf16.mxu0 0
  %686 = vmatpush2.bf16.msra.mxu0 0
  %687 = vmatprep.subr.bf16.mxu0 0
  %688 = vmatpush2.bf16.msra.mxu0 0
  %689 = vmatprep.subr.bf16.mxu0 0
  %690 = vmatpush2.bf16.msra.mxu0 0
  %691 = vmatprep.subr.bf16.mxu0 0
  %692 = vmatpush2.bf16.msra.mxu0 0
  %693 = vmatprep.mubr.bf16.mxu0 0
  %694 = vmatmul.mubr.bf16.gmra.mxu0 %v656
  %v695 = vpop.f32.mrf.mxu0
  %v696 = vadd.f32 0.0, %v695
  %v697 = vpop.f32.mrf.mxu0
  %v698 = vpop.f32.mrf.mxu0
  %v699 = vadd.f32 0.0, %v698
  %v700 = vpop.f32.mrf.mxu0
  %701 = vmatprep.mubr.bf16.mxu0 0
  %702 = vmatmul.mubr.bf16.gmra.mxu0 %v659
  %v703 = vpop.f32.mrf.mxu0
  %v704 = vadd.f32 0.0, %v703
  %v705 = vpop.f32.mrf.mxu0
  %v706 = vpop.f32.mrf.mxu0
  %v707 = vadd.f32 0.0, %v706
  %v708 = vpop.f32.mrf.mxu0
  %709 = vdwg.mxu0
  %v710 = vld [vmem:[#allocation3] sm:$0xff]
  %v711 = vld [vmem:[#allocation3 + $0x8] sm:$0xf]
  %v712 = vld [vmem:[#allocation3 + $0xc] sm:$0xff]
  %v713 = vld [vmem:[#allocation3 + $0x14] sm:$0xf]
  %v714 = vld [vmem:[#allocation3 + $0x18] sm:$0xff]
  %v715 = vld [vmem:[#allocation3 + $0x20] sm:$0xf]
  %v716 = vld [vmem:[#allocation3 + $0x24] sm:$0xff]
  %v717 = vld [vmem:[#allocation3 + $0x2c] sm:$0xf]
  %v718 = vld [vmem:[%s6] sm:$0xf]
  %v719 = vld [vmem:[%s6 + $0x4] sm:$0xf]
  %v720 = vld [vmem:[%s6 + $0x8] sm:$0xf]
  %v721 = vld [vmem:[%s6 + $0xc] sm:$0xf]
  %v722 = vld [vmem:[%s6 + $0x10] sm:$0xf]
  %v723 = vld [vmem:[%s6 + $0x14] sm:$0xf]
  %v724 = vld [vmem:[%s6 + $0x18] sm:$0xf]
  %v725 = vld [vmem:[%s6 + $0x1c] sm:$0xf]
  %v726 = vld [vmem:[%s6 + $0x20] sm:$0xf]
  %v727 = vld [vmem:[%s6 + $0x24] sm:$0xf]
  %v728 = vld [vmem:[%s6 + $0x28] sm:$0xf]
  %v729 = vld [vmem:[%s6 + $0x2c] sm:$0xf]
  %v730 = vld [vmem:[%s6 + $0x30] sm:$0xf]
  %v731 = vld [vmem:[%s6 + $0x34] sm:$0xf]
  %v732 = vld [vmem:[%s6 + $0x38] sm:$0xf]
  %v733 = vld [vmem:[%s6 + $0x3c] sm:$0xf]
  %v734 = vld [vmem:[%s6 + $0x40] sm:$0xf]
  %v735 = vld [vmem:[%s6 + $0x44] sm:$0xf]
  %v736 = vld [vmem:[%s6 + $0x48] sm:$0xf]
  %v737 = vld [vmem:[%s6 + $0x4c] sm:$0xf]
  %v738 = vld [vmem:[%s6 + $0x50] sm:$0xf]
  %v739 = vld [vmem:[%s6 + $0x54] sm:$0xf]
  %v740 = vld [vmem:[%s6 + $0x58] sm:$0xf]
  %v741 = vld [vmem:[%s6 + $0x5c] sm:$0xf]
  %v742 = vld [vmem:[%s6 + $0x60] sm:$0xf]
  %v743 = vld [vmem:[%s6 + $0x64] sm:$0xf]
  %v744 = vld [vmem:[%s6 + $0x68] sm:$0xf]
  %v745 = vld [vmem:[%s6 + $0x6c] sm:$0xf]
  %v746 = vld [vmem:[%s6 + $0x70] sm:$0xf]
  %v747 = vld [vmem:[%s6 + $0x74] sm:$0xf]
  %v748 = vld [vmem:[%s6 + $0x78] sm:$0xf]
  %v749 = vld [vmem:[%s6 + $0x7c] sm:$0xf]
  %v750 = vld [vmem:[%s6 + $0x80] sm:$0xf]
  %v751 = vld [vmem:[%s6 + $0x84] sm:$0xf]
  %v752 = vld [vmem:[%s6 + $0x88] sm:$0xf]
  %v753 = vld [vmem:[%s6 + $0x8c] sm:$0xf]
  %v754 = vld [vmem:[%s6 + $0x90] sm:$0xf]
  %v755 = vld [vmem:[%s6 + $0x94] sm:$0xf]
  %v756 = vld [vmem:[%s6 + $0x98] sm:$0xf]
  %v757 = vld [vmem:[%s6 + $0x9c] sm:$0xf]
  %v758 = vld [vmem:[%s6 + $0xa0] sm:$0xf]
  %v759 = vld [vmem:[%s6 + $0xa4] sm:$0xf]
  %v760 = vld [vmem:[%s6 + $0xa8] sm:$0xf]
  %v761 = vld [vmem:[%s6 + $0xac] sm:$0xf]
  %v762 = vld [vmem:[%s6 + $0xb0] sm:$0xf]
  %v763 = vld [vmem:[%s6 + $0xb4] sm:$0xf]
  %v764 = vld [vmem:[%s6 + $0xb8] sm:$0xf]
  %v765 = vld [vmem:[%s6 + $0xbc] sm:$0xf]
  %v774 = vunpack.c.l.b16 %v710
  %v775 = vunpack.c.h.b16 %v710
  %v776 = vunpack.c.l.b16 %v711
  %v777 = vunpack.c.l.b16 %v712
  %v778 = vunpack.c.h.b16 %v712
  %v779 = vunpack.c.l.b16 %v713
  %v780 = vunpack.c.l.b16 %v714
  %v781 = vunpack.c.h.b16 %v714
  %v782 = vunpack.c.l.b16 %v715
  %v783 = vunpack.c.l.b16 %v716
  %v784 = vunpack.c.h.b16 %v716
  %v785 = vunpack.c.l.b16 %v717
  %v786 = vpack.c.b16 %v777, %v774
  %v787 = vpack.c.b16 %v778, %v775
  %v788 = vpack.c.b16 %v779, %v776
  %v789 = vpack.c.b16 %v783, %v780
  %v790 = vpack.c.b16 %v784, %v781
  %v791 = vpack.c.b16 %v785, %v782
  %v846 = vunpack.c.l.b16 %v718
  %v847 = vunpack.c.l.b16 %v719
  %v848 = vunpack.c.l.b16 %v720
  %v849 = vunpack.c.l.b16 %v721
  %v850 = vunpack.c.l.b16 %v722
  %v851 = vunpack.c.l.b16 %v723
  %v852 = vunpack.c.l.b16 %v724
  %v853 = vunpack.c.l.b16 %v725
  %v854 = vunpack.c.l.b16 %v726
  %v855 = vunpack.c.l.b16 %v727
  %v856 = vunpack.c.l.b16 %v728
  %v857 = vunpack.c.l.b16 %v729
  %v858 = vunpack.c.l.b16 %v730
  %v859 = vunpack.c.l.b16 %v731
  %v860 = vunpack.c.l.b16 %v732
  %v861 = vunpack.c.l.b16 %v733
  %v862 = vunpack.c.l.b16 %v734
  %v863 = vunpack.c.l.b16 %v735
  %v864 = vunpack.c.l.b16 %v736
  %v865 = vunpack.c.l.b16 %v737
  %v866 = vunpack.c.l.b16 %v738
  %v867 = vunpack.c.l.b16 %v739
  %v868 = vunpack.c.l.b16 %v740
  %v869 = vunpack.c.l.b16 %v741
  %v870 = vunpack.c.l.b16 %v742
  %v871 = vunpack.c.l.b16 %v743
  %v872 = vunpack.c.l.b16 %v744
  %v873 = vunpack.c.l.b16 %v745
  %v874 = vunpack.c.l.b16 %v746
  %v875 = vunpack.c.l.b16 %v747
  %v876 = vunpack.c.l.b16 %v748
  %v877 = vunpack.c.l.b16 %v749
  %v878 = vunpack.c.l.b16 %v750
  %v879 = vunpack.c.l.b16 %v751
  %v880 = vunpack.c.l.b16 %v752
  %v881 = vunpack.c.l.b16 %v753
  %v882 = vunpack.c.l.b16 %v754
  %v883 = vunpack.c.l.b16 %v755
  %v884 = vunpack.c.l.b16 %v756
  %v885 = vunpack.c.l.b16 %v757
  %v886 = vunpack.c.l.b16 %v758
  %v887 = vunpack.c.l.b16 %v759
  %v888 = vunpack.c.l.b16 %v760
  %v889 = vunpack.c.l.b16 %v761
  %v890 = vunpack.c.l.b16 %v762
  %v891 = vunpack.c.l.b16 %v763
  %v892 = vunpack.c.l.b16 %v764
  %v893 = vunpack.c.l.b16 %v765
  %v894 = vpack.c.b16 %v847, %v846
  %v895 = vpack.c.b16 %v849, %v848
  %v896 = vpack.c.b16 %v851, %v850
  %v897 = vpack.c.b16 %v853, %v852
  %v898 = vpack.c.b16 %v855, %v854
  %v899 = vpack.c.b16 %v857, %v856
  %v900 = vpack.c.b16 %v859, %v858
  %v901 = vpack.c.b16 %v861, %v860
  %v902 = vpack.c.b16 %v863, %v862
  %v903 = vpack.c.b16 %v865, %v864
  %v904 = vpack.c.b16 %v867, %v866
  %v905 = vpack.c.b16 %v869, %v868
  %v906 = vpack.c.b16 %v871, %v870
  %v907 = vpack.c.b16 %v873, %v872
  %v908 = vpack.c.b16 %v875, %v874
  %v909 = vpack.c.b16 %v877, %v876
  %v910 = vpack.c.b16 %v879, %v878
  %v911 = vpack.c.b16 %v881, %v880
  %v912 = vpack.c.b16 %v883, %v882
  %v913 = vpack.c.b16 %v885, %v884
  %v914 = vpack.c.b16 %v887, %v886
  %v915 = vpack.c.b16 %v889, %v888
  %v916 = vpack.c.b16 %v891, %v890
  %v917 = vpack.c.b16 %v893, %v892
  %942 = vmatprep.subr.bf16.mxu0 0
  %943 = vmatpush1.bf16.msra.mxu0 %v901
  %944 = vmatprep.subr.bf16.mxu0 0
  %945 = vmatpush1.bf16.msra.mxu0 %v900
  %946 = vmatprep.subr.bf16.mxu0 0
  %947 = vmatpush1.bf16.msra.mxu0 %v899
  %948 = vmatprep.subr.bf16.mxu0 0
  %949 = vmatpush1.bf16.msra.mxu0 %v898
  %950 = vmatprep.subr.bf16.mxu0 0
  %951 = vmatpush1.bf16.msra.mxu0 %v897
  %952 = vmatprep.subr.bf16.mxu0 0
  %953 = vmatpush1.bf16.msra.mxu0 %v896
  %954 = vmatprep.subr.bf16.mxu0 0
  %955 = vmatpush1.bf16.msra.mxu0 %v895
  %956 = vmatprep.subr.bf16.mxu0 0
  %957 = vmatpush1.bf16.msra.mxu0 %v894
  %958 = vmatprep.subr.bf16.mxu0 0
  %959 = vmatpush2.bf16.msra.mxu0 %v909
  %960 = vmatprep.subr.bf16.mxu0 0
  %961 = vmatpush2.bf16.msra.mxu0 %v908
  %962 = vmatprep.subr.bf16.mxu0 0
  %963 = vmatpush2.bf16.msra.mxu0 %v907
  %964 = vmatprep.subr.bf16.mxu0 0
  %965 = vmatpush2.bf16.msra.mxu0 %v906
  %966 = vmatprep.subr.bf16.mxu0 0
  %967 = vmatpush2.bf16.msra.mxu0 %v905
  %968 = vmatprep.subr.bf16.mxu0 0
  %969 = vmatpush2.bf16.msra.mxu0 %v904
  %970 = vmatprep.subr.bf16.mxu0 0
  %971 = vmatpush2.bf16.msra.mxu0 %v903
  %972 = vmatprep.subr.bf16.mxu0 0
  %973 = vmatpush2.bf16.msra.mxu0 %v902
  %974 = vmatprep.mubr.bf16.mxu0 %v787
  %975 = vmatmul.mubr.bf16.gmra.mxu0 %v786
  %v976 = vpop.f32.mrf.mxu0
  %v977 = vadd.f32 %v696, %v976
  %v978 = vpop.f32.mrf.mxu0
  %v979 = vpop.f32.mrf.mxu0
  %v980 = vadd.f32 %v699, %v979
  %v981 = vpop.f32.mrf.mxu0
  %982 = vmatprep.mubr.bf16.mxu0 %v790
  %983 = vmatmul.mubr.bf16.gmra.mxu0 %v789
  %v984 = vpop.f32.mrf.mxu0
  %v985 = vadd.f32 %v704, %v984
  %v986 = vpop.f32.mrf.mxu0
  %v987 = vpop.f32.mrf.mxu0
  %v988 = vadd.f32 %v707, %v987
  %v989 = vpop.f32.mrf.mxu0
  %990 = vdwg.mxu0
  %991 = vmatprep.subr.bf16.mxu0 0
  %992 = vmatpush1.bf16.msra.mxu0 %v917
  %993 = vmatprep.subr.bf16.mxu0 0
  %994 = vmatpush1.bf16.msra.mxu0 %v916
  %995 = vmatprep.subr.bf16.mxu0 0
  %996 = vmatpush1.bf16.msra.mxu0 %v915
  %997 = vmatprep.subr.bf16.mxu0 0
  %998 = vmatpush1.bf16.msra.mxu0 %v914
  %999 = vmatprep.subr.bf16.mxu0 0
  %1000 = vmatpush1.bf16.msra.mxu0 %v913
  %1001 = vmatprep.subr.bf16.mxu0 0
  %1002 = vmatpush1.bf16.msra.mxu0 %v912
  %1003 = vmatprep.subr.bf16.mxu0 0
  %1004 = vmatpush1.bf16.msra.mxu0 %v911
  %1005 = vmatprep.subr.bf16.mxu0 0
  %1006 = vmatpush1.bf16.msra.mxu0 %v910
  %1007 = vmatprep.subr.bf16.mxu0 0
  %1008 = vmatpush2.bf16.msra.mxu0 0
  %1009 = vmatprep.subr.bf16.mxu0 0
  %1010 = vmatpush2.bf16.msra.mxu0 0
  %1011 = vmatprep.subr.bf16.mxu0 0
  %1012 = vmatpush2.bf16.msra.mxu0 0
  %1013 = vmatprep.subr.bf16.mxu0 0
  %1014 = vmatpush2.bf16.msra.mxu0 0
  %1015 = vmatprep.subr.bf16.mxu0 0
  %1016 = vmatpush2.bf16.msra.mxu0 0
  %1017 = vmatprep.subr.bf16.mxu0 0
  %1018 = vmatpush2.bf16.msra.mxu0 0
  %1019 = vmatprep.subr.bf16.mxu0 0
  %1020 = vmatpush2.bf16.msra.mxu0 0
  %1021 = vmatprep.subr.bf16.mxu0 0
  %1022 = vmatpush2.bf16.msra.mxu0 0
  %1023 = vmatprep.mubr.bf16.mxu0 0
  %1024 = vmatmul.mubr.bf16.gmra.mxu0 %v788
  %v1025 = vpop.f32.mrf.mxu0
  %v1026 = vadd.f32 %v977, %v1025
  %v1027 = vpop.f32.mrf.mxu0
  %v1028 = vpop.f32.mrf.mxu0
  %v1029 = vadd.f32 %v980, %v1028
  %v1030 = vpop.f32.mrf.mxu0
  %1031 = vmatprep.mubr.bf16.mxu0 0
  %1032 = vmatmul.mubr.bf16.gmra.mxu0 %v791
  %v1033 = vpop.f32.mrf.mxu0
  %v1034 = vadd.f32 %v985, %v1033
  %v1035 = vpop.f32.mrf.mxu0
  %v1036 = vpop.f32.mrf.mxu0
  %v1037 = vadd.f32 %v988, %v1036
  %v1038 = vpop.f32.mrf.mxu0
  %1039 = vdwg.mxu0
  %v1040 = vadd.f32 %v1026, %v1029
  %v1041 = vadd.f32 %v1040, %v1034
  %v1042 = vadd.f32 %v1041, %v1037
  %v1043 = vrot.slane %v1042, 4
  %v1044 = vadd.f32 %v1042, %v1043
  %v1045 = vrot.slane %v1044, 2
  %v1046 = vadd.f32 %v1044, %v1045
  %v1047 = vrot.slane %v1046, 1
  %v1048 = vadd.f32 %v1046, %v1047
  %v1049 = vmul.f32 %v1026, %v1026
  %v1050 = vmul.f32 %v1029, %v1029
  %v1051 = vmul.f32 %v1034, %v1034
  %v1052 = vmul.f32 %v1037, %v1037
  %v1053 = vadd.f32 %v1049, %v1050
  %v1054 = vadd.f32 %v1053, %v1051
  %v1055 = vadd.f32 %v1054, %v1052
  %v1056 = vrot.slane %v1055, 4
  %v1057 = vadd.f32 %v1055, %v1056
  %v1058 = vrot.slane %v1057, 2
  %v1059 = vadd.f32 %v1057, %v1058
  %v1060 = vrot.slane %v1059, 1
  %v1061 = vadd.f32 %v1059, %v1060
  %v1062 = vsel %vm359, %v1048, %v1061
  %v1063 = vld [vmem:[%s7] sm:$0xff]
  %v1064 = vld [vmem:[%s7 + $0x8] sm:$0xff]
  %v1065 = vld [vmem:[%s7 + $0x10] sm:$0xff]
  %v1066 = vld [vmem:[%s7 + $0x18] sm:$0xff]
  %v1067 = vld [vmem:[%s7 + $0x20] sm:$0xff]
  %v1068 = vld [vmem:[%s7 + $0x28] sm:$0xff]
  %v1069 = vld [vmem:[%s7 + $0x30] sm:$0xff]
  %v1070 = vld [vmem:[%s7 + $0x38] sm:$0xff]
  %v1071 = vld [vmem:[%s7 + $0x40] sm:$0xff]
  %v1072 = vld [vmem:[%s7 + $0x48] sm:$0xff]
  %v1073 = vld [vmem:[%s7 + $0x50] sm:$0xff]
  %v1074 = vld [vmem:[%s7 + $0x58] sm:$0xff]
  %v1075 = vld [vmem:[%s7 + $0x60] sm:$0xff]
  %v1076 = vld [vmem:[%s7 + $0x68] sm:$0xff]
  %v1077 = vld [vmem:[%s7 + $0x70] sm:$0xff]
  %v1078 = vld [vmem:[%s7 + $0x78] sm:$0xff]
  %1079 = vmatprep.subr.mxu0 0.0
  %1080 = vmatpush1.msra.mxu0 %v1078
  %1081 = vmatprep.subr.mxu0 0.0
  %1082 = vmatpush1.msra.mxu0 %v1077
  %1083 = vmatprep.subr.mxu0 0.0
  %1084 = vmatpush1.msra.mxu0 %v1076
  %1085 = vmatprep.subr.mxu0 0.0
  %1086 = vmatpush1.msra.mxu0 %v1075
  %1087 = vmatprep.subr.mxu0 0.0
  %1088 = vmatpush1.msra.mxu0 %v1074
  %1089 = vmatprep.subr.mxu0 0.0
  %1090 = vmatpush1.msra.mxu0 %v1073
  %1091 = vmatprep.subr.mxu0 0.0
  %1092 = vmatpush1.msra.mxu0 %v1072
  %1093 = vmatprep.subr.mxu0 0.0
  %1094 = vmatpush1.msra.mxu0 %v1071
  %1095 = vmatprep.subr.mxu0 0.0
  %1096 = vmatpush1.msra.mxu0 %v1070
  %1097 = vmatprep.subr.mxu0 0.0
  %1098 = vmatpush1.msra.mxu0 %v1069
  %1099 = vmatprep.subr.mxu0 0.0
  %1100 = vmatpush1.msra.mxu0 %v1068
  %1101 = vmatprep.subr.mxu0 0.0
  %1102 = vmatpush1.msra.mxu0 %v1067
  %1103 = vmatprep.subr.mxu0 0.0
  %1104 = vmatpush1.msra.mxu0 %v1066
  %1105 = vmatprep.subr.mxu0 0.0
  %1106 = vmatpush1.msra.mxu0 %v1065
  %1107 = vmatprep.subr.mxu0 0.0
  %1108 = vmatpush1.msra.mxu0 %v1064
  %1109 = vmatprep.subr.mxu0 0.0
  %1110 = vmatpush1.msra.mxu0 %v1063
  %1111 = vmatprep.subr.mxu0 0.0
  %1112 = vmatpush2.msra.mxu0 0.0
  %1113 = vmatprep.subr.mxu0 0.0
  %1114 = vmatpush2.msra.mxu0 0.0
  %1115 = vmatprep.subr.mxu0 0.0
  %1116 = vmatpush2.msra.mxu0 0.0
  %1117 = vmatprep.subr.mxu0 0.0
  %1118 = vmatpush2.msra.mxu0 0.0
  %1119 = vmatprep.subr.mxu0 0.0
  %1120 = vmatpush2.msra.mxu0 0.0
  %1121 = vmatprep.subr.mxu0 0.0
  %1122 = vmatpush2.msra.mxu0 0.0
  %1123 = vmatprep.subr.mxu0 0.0
  %1124 = vmatpush2.msra.mxu0 0.0
  %1125 = vmatprep.subr.mxu0 0.0
  %1126 = vmatpush2.msra.mxu0 0.0
  %1127 = vmatprep.subr.mxu0 0.0
  %1128 = vmatpush2.msra.mxu0 0.0
  %1129 = vmatprep.subr.mxu0 0.0
  %1130 = vmatpush2.msra.mxu0 0.0
  %1131 = vmatprep.subr.mxu0 0.0
  %1132 = vmatpush2.msra.mxu0 0.0
  %1133 = vmatprep.subr.mxu0 0.0
  %1134 = vmatpush2.msra.mxu0 0.0
  %1135 = vmatprep.subr.mxu0 0.0
  %1136 = vmatpush2.msra.mxu0 0.0
  %1137 = vmatprep.subr.mxu0 0.0
  %1138 = vmatpush2.msra.mxu0 0.0
  %1139 = vmatprep.subr.mxu0 0.0
  %1140 = vmatpush2.msra.mxu0 0.0
  %1141 = vmatprep.subr.mxu0 0.0
  %1142 = vmatpush2.msra.mxu0 0.0
  %1143 = vmatprep.mubr.f32.mxu0 0.0
  %1144 = vmatmul.mubr.f32.gmra.mxu0 %v1062
  %v1145 = vpop.f32.mrf.mxu0
  %v1146 = vadd.f32 0.0, %v1145
  %v1147 = vpop.f32.mrf.mxu0
  %1148 = vdwg.mxu0
  %v1149 = vmul.f32 %v1146, %v1146
  %v1151 = vrot.slane %v1149, 7
  %v1153 = vsub.f32 %v1146, %v1151
  %v1154 = vld [vmem:[%s8] sm:$0x1]
  %v1155 = vadd.f32 %v1153, 1e-05
  %v1156 = vrsqrt.pop %v1155
  %v1159 = vunpack.c.l.s4 1966171168
  %v1160 = vunpack.c.0.s8 %v1159
  %v1161 = vlaneseq
  %v1162 = vshrl.u32 %v1161, 7
  %v1163 = vsub.s32 %v1160, %v1162
  %v1164 = vrot.slane %v1156, %v1163
  %v1165 = vcombine.high %v1164, %v1164
  %v1167 = vunpack.c.l.s4 1966171168
  %v1168 = vunpack.c.0.s8 %v1167
  %v1169 = vlaneseq
  %v1170 = vshrl.u32 %v1169, 7
  %v1171 = vsub.s32 %v1168, %v1170
  %v1172 = vrot.slane %v1165, %v1171
  %v1174 = vmul.f32 %v1154, %v1172
  %v1175 = vld [vmem:[%s9] sm:$0x1]
  %v1176 = vmul.f32 %v1146, %v1174
  %v1177 = vsub.f32 %v1175, %v1176
  %v1179 = vlaneseq
  %v1180 = vshrl.u32 %v1179, 7
  %v1181 = vsub.s32 0, %v1180
  %v1182 = vrot.slane %v1174, %v1181
  %v1184 = vmul.f32 %v1026, %v1182
  %v1185 = vmul.f32 %v1029, %v1182
  %v1186 = vmul.f32 %v1034, %v1182
  %v1187 = vmul.f32 %v1037, %v1182
  %v1189 = vlaneseq
  %v1190 = vshrl.u32 %v1189, 7
  %v1191 = vsub.s32 0, %v1190
  %v1192 = vrot.slane %v1177, %v1191
  %v1194 = vadd.f32 %v1184, %v1192
  %v1195 = vadd.f32 %v1185, %v1192
  %v1196 = vadd.f32 %v1186, %v1192
  %v1197 = vadd.f32 %v1187, %v1192
  %v1198 = vmul.f32 %v1194, 0.2
  %v1199 = vmul.f32 %v1195, 0.2
  %v1200 = vmul.f32 %v1196, 0.2
  %v1201 = vmul.f32 %v1197, 0.2
  %v1202 = vmax.f32 %v1194, %v1198
  %v1203 = vmax.f32 %v1195, %v1199
  %v1204 = vmax.f32 %v1196, %v1200
  %v1205 = vmax.f32 %v1197, %v1201
  %1206 = vst [vmem:[%s10] sm:$0xff] %v1202
  %1207 = vst [vmem:[%s10 + $0x8] sm:$0xff] %v1203
  %1208 = vst [vmem:[%s10 + $0x10] sm:$0xff] %v1204
  %1209 = vst [vmem:[%s10 + $0x18] sm:$0xff] %v1205
  // Predicated region
  $region42: #{residual_block.1} parent=0 // pred_check
    _
  $region43: #{residual_block.1} parent=0 // pred_check_branch
    %1211 = sbr.rel (0) target = $region45
  $region44: #{residual_block.1} parent=0 // pred_region
    _
  $region45: #{residual_block.1} parent=0 // pred_fallthru
    _
  // Predicated region
  $region46: #{residual_block.1} parent=0 // pred_check
    _
  $region47: #{residual_block.1} parent=0 // pred_check_branch
    %1213 = sbr.rel (0) target = $region49
  $region48: #{residual_block.1} parent=0 // pred_region
    _
  $region49: #{residual_block.1} parent=0 // pred_fallthru
    _

</llo_original>
